<compile_context>
chip_gen: v7x
topology: tpu7x:2x2x1
jax: 0.10.0
libtpu: 0.0.40
codegen_flags: <defaults>
</compile_context>

<pallas_src>
import jax
import jax.numpy as jnp
from jax.experimental import pallas as pl
from jax.experimental.pallas import tpu as pltpu

# Hyperparameters consistent with ConvNet_Shallow defaults.
WINDOW = 3        # conv window over the sequence axis
EMB = 300         # embedding width, matches Conv2d kernel width 300
FEATURES = 256    # number of conv filters
HIDDEN = 32       # fc1 output
NCLASS = 4        # fc2 output (AGNews classes)

_LANE_E = 384     # VMEM lane-padded width of EMB=300
_LANE_F = 256     # VMEM lane width of FEATURES


def _round_up(a, m):
    return -(-a // m) * m


def _vmem_usage_bytes(tn, hc, h_in, x_bytes):
    """Rough per-grid-step VMEM footprint used to size (tn, hc)."""
    hcs = hc + 16                                        # chunk slab rows incl. halo
    x_tile = 2 * tn * h_in * _LANE_E * x_bytes           # double-buffered input block
    slab_bf16 = tn * hcs * _LANE_E * 2                   # in-kernel bf16 cast of one slab
    tap_f32 = tn * hcs * _LANE_F * 4                     # the single live conv tap
    acc_f32 = tn * hc * _LANE_F * 4                      # running conv accumulator
    shift_tmp = tn * hc * _LANE_F * 4                    # sliced-tap temporary during the add
    weights = 2 * (WINDOW * _round_up(EMB, 16) * FEATURES * 2   # resident params,
                   + FEATURES * 128 * 2 + 3 * 8 * _LANE_E * 4)  # default double-buffered
    misc = 2 << 20                                       # fc temporaries / compiler scratch
    return x_tile + slab_bf16 + tap_f32 + acc_f32 + shift_tmp + weights + misc


def _build_kernel(win, hout, hc, nchunks, h_in):
    """Kernel specialized on static conv geometry (window, valid rows, chunking)."""

    def kernel(x_ref, wc_ref, bc_ref, w1_ref, b1_ref, w2_ref, b2_ref, out_ref):
        # x_ref : (TN, H, EMB)  input tile (f32 or bf16; cast to bf16 in-kernel)
        # wc_ref: (WIN, EMB, F) bf16 conv weight
        # bc_ref: (1, F) f32 conv bias
        # w1_ref: (F, 32) bf16, b1_ref: (1, 32) f32
        # w2_ref: (32, 4) bf16, b2_ref: (1, 4) f32
        # out_ref: (TN, 4) f32 log-probs
        tn = x_ref.shape[0]
        f = wc_ref.shape[-1]

        bc = bc_ref[...]                                 # (1, F) f32, loaded once
        pooled = jnp.zeros((tn, f), jnp.float32)         # running max; 0 ok post-ReLU

        # Stream conv + bias + ReLU + max-pool over H chunks (static trip count):
        # only one bf16 slab, one f32 tap and the conv accumulator are live at a time.
        for c in range(nchunks):
            start = c * hc                               # multiple of 16 -> aligned slice
            valid = min(hc, hout - start)                # static, > 0
            # 16-aligned slab length when H allows (free bf16 reshape); only a short
            # tail chunk may fall back to an odd length (small one-off relayout).
            rows = min(_round_up(valid + win - 1, 16), h_in - start)
            slab = x_ref[:, start:start + rows, :].astype(jnp.bfloat16)   # (TN, rows, E)
            slab2d = slab.reshape(tn * rows, EMB)

            # Accumulate window taps one at a time; init with the broadcast bias so the
            # separate bias-add VALU pass is folded into the accumulator init.
            conv = jnp.broadcast_to(bc.reshape(1, 1, f), (tn, valid, f))
            for dh in range(win):
                tap = jnp.dot(slab2d, wc_ref[dh],
                              preferred_element_type=jnp.float32).reshape(tn, rows, f)
                # conv[h] += tap[h + dh]; static sublane-shifted slice of the f32 output.
                # (pltpu.roll(tap, -dh, axis=1) is an XLU-slot alternative if the bundle
                #  dump shows this slice eating vld/vst slots.)
                conv = conv + tap[:, dh:dh + valid, :]
            conv = jnp.maximum(conv, 0.0)                              # ReLU (f32)
            pooled = jnp.maximum(pooled, jnp.max(conv, axis=1))        # running (TN, F) max

        # fc1 + ReLU -> fc2 -> log_softmax, once per batch tile.
        # TODO(synk): dropout1/dropout2 are identity in eval (inference) mode; omitted.
        h1 = jnp.dot(pooled.astype(jnp.bfloat16), w1_ref[...],
                     preferred_element_type=jnp.float32) + b1_ref[...]
        h1 = jnp.maximum(h1, 0.0)
        logits = jnp.dot(h1.astype(jnp.bfloat16), w2_ref[...],
                         preferred_element_type=jnp.float32) + b2_ref[...]
        m = jnp.max(logits, axis=-1, keepdims=True)
        lse = jnp.log(jnp.sum(jnp.exp(logits - m), axis=-1, keepdims=True)) + m
        out_ref[...] = logits - lse

    return kernel


def convnet_forward(x_nchw, params, *, batch_tile=None, vmem_limit_bytes=None):
    """x_nchw: (N, 1, H, EMB) float32 (or bfloat16), matching the PyTorch input."""
    wc, bc, w1, b1, w2, b2 = params
    N, C, H, E = x_nchw.shape
    assert C == 1 and E == EMB and H >= WINDOW
    hout = H - WINDOW + 1

    # Free layout change only: squeeze the channel dim (leading-dim reshape, no copy).
    # No wrapper-side cast / pad passes: the kernel casts each chunk slab to bf16
    # after the DMA, and the ragged batch tail is a partial last block (masked writes).
    x = x_nchw.reshape(N, H, E)
    x_bytes = x.dtype.itemsize

    # Per-generation VMEM budget: v7x (64 MiB physical) -> ~48 MiB scoped;
    # v5e/v6e (128 MiB) -> up to 96 MiB. Fallback assumes the smallest (v7x).
    try:
        vmem_cap = int(pltpu.get_tpu_info().vmem_capacity_bytes)
    except Exception:
        vmem_cap = 64 * 1024 * 1024
    if vmem_limit_bytes is None:
        vmem_limit_bytes = min((vmem_cap * 3) // 4, 96 * 1024 * 1024)
    budget = int(vmem_limit_bytes) - (4 << 20)

    # Batch tile: multiple of 8, capped at ceil(N/2) so the batch grid has >= 2
    # steps whenever N > 8 (lets "parallel" semantics use both TensorCores on v7x).
    if batch_tile is None:
        tn = min(64, _round_up(-(-N // 2), 8))
    else:
        tn = _round_up(int(batch_tile), 8)
    tn = max(tn, 8)

    hc_cap = _round_up(hout, 16)

    def best_hc(tn_):
        if _vmem_usage_bytes(tn_, 16, H, x_bytes) > budget:
            return None
        hc_ = 16
        while hc_ + 16 <= hc_cap and _vmem_usage_bytes(tn_, hc_ + 16, H, x_bytes) <= budget:
            hc_ += 16
        return hc_

    hc = best_hc(tn)
    while hc is None and tn > 8:
        tn = max(8, _round_up(tn // 2, 8))
        hc = best_hc(tn)
    if hc is None:
        tn, hc = 8, 16   # last resort; may spill but still compiles

    # Balance chunk sizes so the tail chunk is not mostly padding.
    nchunks = -(-hout // hc)
    hc = min(hc, _round_up(-(-hout // nchunks), 16))
    nchunks = -(-hout // hc)

    # One-time tiny weight casts (bf16 MXU operands, f32 accumulation everywhere).
    wc_b = wc.astype(jnp.bfloat16)
    w1_b = w1.astype(jnp.bfloat16)
    w2_b = w2.astype(jnp.bfloat16)
    bc_f = bc.astype(jnp.float32)
    b1_f = b1.astype(jnp.float32)
    b2_f = b2.astype(jnp.float32)

    kernel = _build_kernel(WINDOW, hout, hc, nchunks, H)
    out = pl.pallas_call(
        kernel,
        out_shape=jax.ShapeDtypeStruct((N, NCLASS), jnp.float32),
        grid=(-(-N // tn),),
        in_specs=[
            pl.BlockSpec((tn, H, EMB), lambda i: (i, 0, 0)),             # batch-tiled, pipelined
            # Constant-index weights/biases stay VMEM-resident across grid steps
            # (their default double-buffer is <0.6 MiB and is accounted in the budget).
            pl.BlockSpec((WINDOW, EMB, FEATURES), lambda i: (0, 0, 0)),
            pl.BlockSpec((1, FEATURES), lambda i: (0, 0)),
            pl.BlockSpec((FEATURES, HIDDEN), lambda i: (0, 0)),
            pl.BlockSpec((1, HIDDEN), lambda i: (0, 0)),
            pl.BlockSpec((HIDDEN, NCLASS), lambda i: (0, 0)),
            pl.BlockSpec((1, NCLASS), lambda i: (0, 0)),
        ],
        out_specs=pl.BlockSpec((tn, NCLASS), lambda i: (i, 0)),
        compiler_params=pltpu.CompilerParams(
            dimension_semantics=("parallel",),        # dual-TC sharding on v7x
            vmem_limit_bytes=int(vmem_limit_bytes),
        ),
    )(x, wc_b, bc_f, w1_b, b1_f, w2_b, b2_f)
    return out


def init_params(key):
    k = jax.random.split(key, 6)
    scale = 0.05
    wc = scale * jax.random.normal(k[0], (WINDOW, EMB, FEATURES), jnp.float32)
    bc = scale * jax.random.normal(k[1], (1, FEATURES), jnp.float32)
    w1 = scale * jax.random.normal(k[2], (FEATURES, HIDDEN), jnp.float32)
    b1 = scale * jax.random.normal(k[3], (1, HIDDEN), jnp.float32)
    w2 = scale * jax.random.normal(k[4], (HIDDEN, NCLASS), jnp.float32)
    b2 = scale * jax.random.normal(k[5], (1, NCLASS), jnp.float32)
    return (wc, bc, w1, b1, w2, b2)


def ref_forward(x_nchw, params):
    """Plain-JAX fp32 reference mirroring the PyTorch forward (eval mode)."""
    wc, bc, w1, b1, w2, b2 = params
    N, _, H, E = x_nchw.shape
    x = x_nchw.reshape(N, H, E)
    Hout = H - WINDOW + 1
    conv = jnp.stack(
        [sum(x[:, h + dh, :] @ wc[dh] for dh in range(WINDOW)) for h in range(Hout)],
        axis=1,
    ) + bc  # (N, Hout, F)
    conv = jnp.maximum(conv, 0.0)
    pooled = jnp.max(conv, axis=1)                   # (N, F)
    h1 = jnp.maximum(pooled @ w1 + b1, 0.0)
    logits = h1 @ w2 + b2
    return jax.nn.log_softmax(logits, axis=-1)


if __name__ == "__main__":
    key = jax.random.PRNGKey(0)
    kx, kp = jax.random.split(key)

    # batch=13, seq_len=16: exercises batch tiling (grid of 2), the ragged/partial
    # last batch block, and a non-multiple-of-16 chunk tail, while staying tiny.
    N, H = 13, 16
    x = jax.random.normal(kx, (N, 1, H, EMB), jnp.float32)   # NCHW, C=1
    params = init_params(kp)

    out = convnet_forward(x, params)
    out = jax.block_until_ready(out)

    ref = ref_forward(x, params)
    assert out.shape == (N, NCLASS)
    # bf16 matmul operands with f32 accumulation vs. the pure-f32 reference.
    assert jnp.allclose(out, ref, atol=5e-2, rtol=5e-2), float(jnp.max(jnp.abs(out - ref)))

    print("KERNEL_OK")
</pallas_src>

<mosaic_0001>
module attributes {stable_mosaic.version = 11 : i64} {
  func.func @kernel(%arg0: i32, %arg1: memref<8x16x300xf32, #tpu.memory_space<vmem>>, %arg2: memref<3x300x256xbf16, #tpu.memory_space<vmem>>, %arg3: memref<1x256xf32, #tpu.memory_space<vmem>>, %arg4: memref<256x32xbf16, #tpu.memory_space<vmem>>, %arg5: memref<1x32xf32, #tpu.memory_space<vmem>>, %arg6: memref<32x4xbf16, #tpu.memory_space<vmem>>, %arg7: memref<1x4xf32, #tpu.memory_space<vmem>>, %arg8: memref<8x4xf32, #tpu.memory_space<vmem>>) attributes {dimension_semantics = [#tpu.dimension_semantics<parallel>], iteration_bounds = array<i64: 2>, scalar_prefetch = 0 : i64, scratch_operands = 0 : i64, tpu.core_type = #tpu.core_type<tc>, window_params = [{transform_indices = @transform_0, window_bounds = array<i64: 8, 16, 300>}, {pipeline_mode = #tpu.pipeline_mode<synchronous>, transform_indices = @transform_1, window_bounds = array<i64: 3, 300, 256>}, {pipeline_mode = #tpu.pipeline_mode<synchronous>, transform_indices = @transform_2, window_bounds = array<i64: 1, 256>}, {pipeline_mode = #tpu.pipeline_mode<synchronous>, transform_indices = @transform_3, window_bounds = array<i64: 256, 32>}, {pipeline_mode = #tpu.pipeline_mode<synchronous>, transform_indices = @transform_4, window_bounds = array<i64: 1, 32>}, {pipeline_mode = #tpu.pipeline_mode<synchronous>, transform_indices = @transform_5, window_bounds = array<i64: 32, 4>}, {pipeline_mode = #tpu.pipeline_mode<synchronous>, transform_indices = @transform_6, window_bounds = array<i64: 1, 4>}, {transform_indices = @transform_7, window_bounds = array<i64: 8, 4>}]} {
    %c0 = arith.constant 0 : index
    %c0_0 = arith.constant 0 : index
    %0 = vector.load %arg3[%c0, %c0_0] : memref<1x256xf32, #tpu.memory_space<vmem>>, vector<1x256xf32>
    %cst = arith.constant 0.000000e+00 : f32
    %1 = vector.broadcast %cst : f32 to vector<8x256xf32>
    %c0_1 = arith.constant 0 : index
    %c0_2 = arith.constant 0 : index
    %c0_3 = arith.constant 0 : index
    %2 = vector.load %arg1[%c0_1, %c0_2, %c0_3] : memref<8x16x300xf32, #tpu.memory_space<vmem>>, vector<8x16x300xf32>
    %3 = arith.truncf %2 : vector<8x16x300xf32> to vector<8x16x300xbf16>
    %4 = vector.shape_cast %3 : vector<8x16x300xbf16> to vector<128x300xbf16>
    %5 = vector.shape_cast %0 : vector<1x256xf32> to vector<1x1x256xf32>
    %6 = vector.shape_cast %5 : vector<1x1x256xf32> to vector<1x1x256xf32>
    %7 = vector.broadcast %6 : vector<1x1x256xf32> to vector<8x14x256xf32>
    %c0_4 = arith.constant 0 : index
    %c0_5 = arith.constant 0 : index
    %c0_6 = arith.constant 0 : index
    %8 = vector.load %arg2[%c0_4, %c0_5, %c0_6] : memref<3x300x256xbf16, #tpu.memory_space<vmem>>, vector<1x300x256xbf16>
    %9 = vector.shape_cast %8 : vector<1x300x256xbf16> to vector<300x256xbf16>
    %cst_7 = arith.constant dense<0.000000e+00> : vector<128x256xf32>
    %10 = tpu.matmul %4, %9, %cst_7 {dimension_numbers = #tpu.dot_dimension_numbers<[1], [0], [0], [1], [0, 0, 1, 1], [], []>} : vector<128x300xbf16>, vector<300x256xbf16>, vector<128x256xf32> -> vector<128x256xf32>
    %11 = vector.shape_cast %10 : vector<128x256xf32> to vector<8x16x256xf32>
    %12 = vector.extract_strided_slice %11 {offsets = [0, 0, 0], sizes = [8, 14, 256], strides = [1, 1, 1]} : vector<8x16x256xf32> to vector<8x14x256xf32>
    %13 = arith.addf %7, %12 : vector<8x14x256xf32>
    %c1 = arith.constant 1 : index
    %c0_8 = arith.constant 0 : index
    %c0_9 = arith.constant 0 : index
    %14 = vector.load %arg2[%c1, %c0_8, %c0_9] : memref<3x300x256xbf16, #tpu.memory_space<vmem>>, vector<1x300x256xbf16>
    %15 = vector.shape_cast %14 : vector<1x300x256xbf16> to vector<300x256xbf16>
    %cst_10 = arith.constant dense<0.000000e+00> : vector<128x256xf32>
    %16 = tpu.matmul %4, %15, %cst_10 {dimension_numbers = #tpu.dot_dimension_numbers<[1], [0], [0], [1], [0, 0, 1, 1], [], []>} : vector<128x300xbf16>, vector<300x256xbf16>, vector<128x256xf32> -> vector<128x256xf32>
    %17 = vector.shape_cast %16 : vector<128x256xf32> to vector<8x16x256xf32>
    %18 = vector.extract_strided_slice %17 {offsets = [0, 1, 0], sizes = [8, 14, 256], strides = [1, 1, 1]} : vector<8x16x256xf32> to vector<8x14x256xf32>
    %19 = arith.addf %13, %18 : vector<8x14x256xf32>
    %c2 = arith.constant 2 : index
    %c0_11 = arith.constant 0 : index
    %c0_12 = arith.constant 0 : index
    %20 = vector.load %arg2[%c2, %c0_11, %c0_12] : memref<3x300x256xbf16, #tpu.memory_space<vmem>>, vector<1x300x256xbf16>
    %21 = vector.shape_cast %20 : vector<1x300x256xbf16> to vector<300x256xbf16>
    %cst_13 = arith.constant dense<0.000000e+00> : vector<128x256xf32>
    %22 = tpu.matmul %4, %21, %cst_13 {dimension_numbers = #tpu.dot_dimension_numbers<[1], [0], [0], [1], [0, 0, 1, 1], [], []>} : vector<128x300xbf16>, vector<300x256xbf16>, vector<128x256xf32> -> vector<128x256xf32>
    %23 = vector.shape_cast %22 : vector<128x256xf32> to vector<8x16x256xf32>
    %24 = vector.extract_strided_slice %23 {offsets = [0, 2, 0], sizes = [8, 14, 256], strides = [1, 1, 1]} : vector<8x16x256xf32> to vector<8x14x256xf32>
    %25 = arith.addf %19, %24 : vector<8x14x256xf32>
    %cst_14 = arith.constant 0.000000e+00 : f32
    %26 = vector.broadcast %cst_14 : f32 to vector<8x14x256xf32>
    %27 = arith.maximumf %25, %26 : vector<8x14x256xf32>
    %cst_15 = arith.constant dense<0xFF800000> : vector<8x256xf32>
    %28 = vector.multi_reduction <maximumf>, %27, %cst_15 [1] : vector<8x14x256xf32> to vector<8x256xf32>
    %29 = arith.maximumf %1, %28 : vector<8x256xf32>
    %30 = arith.truncf %29 : vector<8x256xf32> to vector<8x256xbf16>
    %c0_16 = arith.constant 0 : index
    %c0_17 = arith.constant 0 : index
    %31 = vector.load %arg4[%c0_16, %c0_17] : memref<256x32xbf16, #tpu.memory_space<vmem>>, vector<256x32xbf16>
    %cst_18 = arith.constant dense<0.000000e+00> : vector<8x32xf32>
    %32 = tpu.matmul %30, %31, %cst_18 {dimension_numbers = #tpu.dot_dimension_numbers<[1], [0], [0], [1], [0, 0, 1, 1], [], []>} : vector<8x256xbf16>, vector<256x32xbf16>, vector<8x32xf32> -> vector<8x32xf32>
    %c0_19 = arith.constant 0 : index
    %c0_20 = arith.constant 0 : index
    %33 = vector.load %arg5[%c0_19, %c0_20] : memref<1x32xf32, #tpu.memory_space<vmem>>, vector<1x32xf32>
    %34 = vector.broadcast %33 : vector<1x32xf32> to vector<8x32xf32>
    %35 = arith.addf %32, %34 : vector<8x32xf32>
    %cst_21 = arith.constant 0.000000e+00 : f32
    %36 = vector.broadcast %cst_21 : f32 to vector<8x32xf32>
    %37 = arith.maximumf %35, %36 : vector<8x32xf32>
    %38 = arith.truncf %37 : vector<8x32xf32> to vector<8x32xbf16>
    %c0_22 = arith.constant 0 : index
    %c0_23 = arith.constant 0 : index
    %39 = vector.load %arg6[%c0_22, %c0_23] : memref<32x4xbf16, #tpu.memory_space<vmem>>, vector<32x4xbf16>
    %cst_24 = arith.constant dense<0.000000e+00> : vector<8x4xf32>
    %40 = tpu.matmul %38, %39, %cst_24 {dimension_numbers = #tpu.dot_dimension_numbers<[1], [0], [0], [1], [0, 0, 1, 1], [], []>} : vector<8x32xbf16>, vector<32x4xbf16>, vector<8x4xf32> -> vector<8x4xf32>
    %c0_25 = arith.constant 0 : index
    %c0_26 = arith.constant 0 : index
    %41 = vector.load %arg7[%c0_25, %c0_26] : memref<1x4xf32, #tpu.memory_space<vmem>>, vector<1x4xf32>
    %42 = vector.broadcast %41 : vector<1x4xf32> to vector<8x4xf32>
    %43 = arith.addf %40, %42 : vector<8x4xf32>
    %cst_27 = arith.constant dense<0xFF800000> : vector<8xf32>
    %44 = vector.multi_reduction <maximumf>, %43, %cst_27 [1] : vector<8x4xf32> to vector<8xf32>
    %45 = vector.shape_cast %44 : vector<8xf32> to vector<8x1xf32>
    %46 = vector.broadcast %45 : vector<8x1xf32> to vector<8x4xf32>
    %47 = arith.subf %43, %46 : vector<8x4xf32>
    %48 = math.exp %47 : vector<8x4xf32>
    %cst_28 = arith.constant dense<0.000000e+00> : vector<8xf32>
    %49 = vector.multi_reduction <add>, %48, %cst_28 [1] : vector<8x4xf32> to vector<8xf32>
    %50 = vector.shape_cast %49 : vector<8xf32> to vector<8x1xf32>
    %51 = math.log %50 : vector<8x1xf32>
    %52 = arith.addf %51, %45 : vector<8x1xf32>
    %53 = vector.broadcast %52 : vector<8x1xf32> to vector<8x4xf32>
    %54 = arith.subf %43, %53 : vector<8x4xf32>
    %c0_29 = arith.constant 0 : index
    %c0_30 = arith.constant 0 : index
    %55 = vector.load %arg8[%c0_29, %c0_30] : memref<8x4xf32, #tpu.memory_space<vmem>>, vector<8x4xf32>
    tpu.vector_store %arg8[%c0_29, %c0_30], %54 {strides = array<i32>} : memref<8x4xf32, #tpu.memory_space<vmem>>, vector<8x4xf32>,
    return
  }
  func.func @transform_0(%arg0: i32) -> (i32, i32, i32) {
    %c0_i32 = arith.constant 0 : i32
    %c0_i32_0 = arith.constant 0 : i32
    %c0_i32_1 = arith.constant 0 : i32
    return %arg0, %c0_i32, %c0_i32_0 : i32, i32, i32
  }
  func.func @transform_1(%arg0: i32) -> (i32, i32, i32) {
    %c0_i32 = arith.constant 0 : i32
    %c0_i32_0 = arith.constant 0 : i32
    %c0_i32_1 = arith.constant 0 : i32
    %c0_i32_2 = arith.constant 0 : i32
    return %c0_i32, %c0_i32_0, %c0_i32_1 : i32, i32, i32
  }
  func.func @transform_2(%arg0: i32) -> (i32, i32) {
    %c0_i32 = arith.constant 0 : i32
    %c0_i32_0 = arith.constant 0 : i32
    %c0_i32_1 = arith.constant 0 : i32
    return %c0_i32, %c0_i32_0 : i32, i32
  }
  func.func @transform_3(%arg0: i32) -> (i32, i32) {
    %c0_i32 = arith.constant 0 : i32
    %c0_i32_0 = arith.constant 0 : i32
    %c0_i32_1 = arith.constant 0 : i32
    return %c0_i32, %c0_i32_0 : i32, i32
  }
  func.func @transform_4(%arg0: i32) -> (i32, i32) {
    %c0_i32 = arith.constant 0 : i32
    %c0_i32_0 = arith.constant 0 : i32
    %c0_i32_1 = arith.constant 0 : i32
    return %c0_i32, %c0_i32_0 : i32, i32
  }
  func.func @transform_5(%arg0: i32) -> (i32, i32) {
    %c0_i32 = arith.constant 0 : i32
    %c0_i32_0 = arith.constant 0 : i32
    %c0_i32_1 = arith.constant 0 : i32
    return %c0_i32, %c0_i32_0 : i32, i32
  }
  func.func @transform_6(%arg0: i32) -> (i32, i32) {
    %c0_i32 = arith.constant 0 : i32
    %c0_i32_0 = arith.constant 0 : i32
    %c0_i32_1 = arith.constant 0 : i32
    return %c0_i32, %c0_i32_0 : i32, i32
  }
  func.func @transform_7(%arg0: i32) -> (i32, i32) {
    %c0_i32 = arith.constant 0 : i32
    %c0_i32_0 = arith.constant 0 : i32
    return %arg0, %c0_i32 : i32, i32
  }
}

</mosaic_0001>

<llo_original>
// kernel: tpu_custom_call.1
$region0: #{tpu_custom_call.1}
  #allocation0 [shape = 'u32[]', space=smem, size = 0x4, offset = 0x4, fixed_abs, tag = 'smem constant byte address 0x4 - core index']
  #allocation1 [shape = 'u32[144,128]{1,0:T(1,128)}', space=vmem, size = 0x12000, scoped, tag = 'internal scratch']
  %s0 = inlined_call_operand.hbm [shape: f32[13,16,300], index: 0, kind: input, shape index: {}]
  %s1 = inlined_call_operand.hbm [shape: bf16[3,300,256], index: 1, kind: input, shape index: {}]
  %s2 = inlined_call_operand.vmem [shape: f32[1,256], index: 2, kind: input, shape index: {}]
  %s3 = inlined_call_operand.vmem [shape: bf16[256,32], index: 3, kind: input, shape index: {}]
  %s4 = inlined_call_operand.vmem [shape: f32[1,32], index: 4, kind: input, shape index: {}]
  %s5 = inlined_call_operand.vmem [shape: bf16[32,4], index: 5, kind: input, shape index: {}]
  %s6 = inlined_call_operand.vmem [shape: f32[1,4], index: 6, kind: input, shape index: {}]
  %s7 = inlined_call_operand.vmem [shape: f32[13,4], index: 7, kind: output, shape index: {}]
  %s8 = sld [smem:[#allocation0]]
  $region69: #{tpu_custom_call.1} parent=0
    _
  %s10 = ssub.s32 1, %s8
  %s11 = scalar_select 0, %s10, %s8
  $region1: #{tpu_custom_call.1} parent=0
    #allocation2 [shape = 'u8[393216]{0}', space=vmem, size = 0x60000, scoped, tag = 'input window, operand 0']
    #allocation3 [shape = 's32[2]{0}', space=sflag, size = 0x8, scoped, tag = 'scoped memory for tpu_custom_call.1']
    #allocation4 [shape = 'u8[466944]{0}', space=vmem, size = 0x72000, scoped, tag = 'input window, operand 1, single buffered']
    #allocation5 [shape = 's32[1]{0}', space=sflag, size = 0x4, scoped, tag = 'scoped memory for tpu_custom_call.1']
    %12 = vsyncpa [#allocation3], 0
    %s13 = scalar_lea.sflag [#allocation3], 1
    %14 = vsyncpa %s13, 0
    %15 = vsyncpa [#allocation5], 0
    loop: start=0, step=1, limit=4
    $region2: #{tpu_custom_call.1} parent=1 // loop_pre_header
      _
    $region3: #{tpu_custom_call.1} parent=1 // loop_header
      %s17 = sphi 0, %s21
      %p18 = scmp.ge.s32.totalorder %s17, 4
      %s27 = sphi 0, %s29
      %s30 = sphi 0, %s27
      %s31 = sphi 0, %s30
      %s47 = sphi 0, %s31
      %s51 = sphi 0, %s51
      %s53 = sphi 0, %s51
      %s54 = sphi 0, %s53
      %s68 = sphi 0, %s54
      %s72 = sphi 0, %s72
      %s74 = sphi 0, %s72
      %s75 = sphi 0, %s74
      %s89 = sphi 0, %s75
      %s93 = sphi 0, %s93
      %s95 = sphi 0, %s93
      %s96 = sphi 0, %s95
      %s110 = sphi 0, %s96
      %s114 = sphi 0, %s114
      %s116 = sphi 0, %s114
      %s117 = sphi 0, %s116
      %s131 = sphi 0, %s117
      %s135 = sphi 0, %s135
      %s137 = sphi 0, %s135
      %s138 = sphi 0, %s137
      %s152 = sphi 0, %s138
      %s156 = sphi 0, %s156
      %s158 = sphi 0, %s156
      %s159 = sphi 0, %s158
      %s173 = sphi 0, %s159
      %s179 = sphi 0, %s181
      %s182 = sphi 0, %s179
      %s183 = sphi 0, %s182
      %s199 = sphi 0, %s183
    $region4: #{tpu_custom_call.1} parent=1 // loop_header_branch
      %20 = sbr.rel (%p18) target = $region8
    $region5: #{tpu_custom_call.1} parent=1 // loop_body
      %s22 = ssub.s32 %s17, 1
      %s23 = ssub.s32 %s17, 2
      %s24 = sadd.s32 %s17, 1
      %s25 = ssub.s32 %s17, %s24
      %p26 = scmp.eq.s32.totalorder %s25, 0
      %s28 = sadd.s32 %s27, 1
      %s29 = scalar_select %p26, %s27, %s28
      %p32 = pneg %p26
      %p33 = scmp.eq.s32.totalorder %s17, 1
      %p34 = por %p32, %p33
      %p35 = scmp.ne.s32.totalorder %s27, %s30
      %p36 = scmp.eq.s32.totalorder %s17, 0
      %p37 = por %p35, %p36
      %p38 = scmp.ne.s32.totalorder %s27, %s30
      %p39 = scmp.eq.s32.totalorder %s22, 1
      %p40 = por %p38, %p39
      %p41 = scmp.ne.s32.totalorder %s30, %s31
      %p42 = scmp.eq.s32.totalorder %s22, 0
      %p43 = por %p41, %p42
      %p44 = scmp.ne.s32.totalorder %s30, %s31
      %p45 = scmp.eq.s32.totalorder %s23, 1
      %p46 = por %p44, %p45
      %p48 = scmp.ne.s32.totalorder %s31, %s47
      %p49 = scmp.eq.s32.totalorder %s23, 0
      %p50 = por %p48, %p49
      %s52 = sadd.s32 %s51, 1
      %p55 = scmp.eq.s32.totalorder %s17, 1
      %p56 = scmp.ne.s32.totalorder %s51, %s53
      %p57 = scmp.eq.s32.totalorder %s17, 0
      %p58 = por %p56, %p57
      %p59 = scmp.ne.s32.totalorder %s51, %s53
      %p60 = scmp.eq.s32.totalorder %s22, 1
      %p61 = por %p59, %p60
      %p62 = scmp.ne.s32.totalorder %s53, %s54
      %p63 = scmp.eq.s32.totalorder %s22, 0
      %p64 = por %p62, %p63
      %p65 = scmp.ne.s32.totalorder %s53, %s54
      %p66 = scmp.eq.s32.totalorder %s23, 1
      %p67 = por %p65, %p66
      %p69 = scmp.ne.s32.totalorder %s54, %s68
      %p70 = scmp.eq.s32.totalorder %s23, 0
      %p71 = por %p69, %p70
      %s73 = sadd.s32 %s72, 1
      %p76 = scmp.eq.s32.totalorder %s17, 1
      %p77 = scmp.ne.s32.totalorder %s72, %s74
      %p78 = scmp.eq.s32.totalorder %s17, 0
      %p79 = por %p77, %p78
      %p80 = scmp.ne.s32.totalorder %s72, %s74
      %p81 = scmp.eq.s32.totalorder %s22, 1
      %p82 = por %p80, %p81
      %p83 = scmp.ne.s32.totalorder %s74, %s75
      %p84 = scmp.eq.s32.totalorder %s22, 0
      %p85 = por %p83, %p84
      %p86 = scmp.ne.s32.totalorder %s74, %s75
      %p87 = scmp.eq.s32.totalorder %s23, 1
      %p88 = por %p86, %p87
      %p90 = scmp.ne.s32.totalorder %s75, %s89
      %p91 = scmp.eq.s32.totalorder %s23, 0
      %p92 = por %p90, %p91
      %s94 = sadd.s32 %s93, 1
      %p97 = scmp.eq.s32.totalorder %s17, 1
      %p98 = scmp.ne.s32.totalorder %s93, %s95
      %p99 = scmp.eq.s32.totalorder %s17, 0
      %p100 = por %p98, %p99
      %p101 = scmp.ne.s32.totalorder %s93, %s95
      %p102 = scmp.eq.s32.totalorder %s22, 1
      %p103 = por %p101, %p102
      %p104 = scmp.ne.s32.totalorder %s95, %s96
      %p105 = scmp.eq.s32.totalorder %s22, 0
      %p106 = por %p104, %p105
      %p107 = scmp.ne.s32.totalorder %s95, %s96
      %p108 = scmp.eq.s32.totalorder %s23, 1
      %p109 = por %p107, %p108
      %p111 = scmp.ne.s32.totalorder %s96, %s110
      %p112 = scmp.eq.s32.totalorder %s23, 0
      %p113 = por %p111, %p112
      %s115 = sadd.s32 %s114, 1
      %p118 = scmp.eq.s32.totalorder %s17, 1
      %p119 = scmp.ne.s32.totalorder %s114, %s116
      %p120 = scmp.eq.s32.totalorder %s17, 0
      %p121 = por %p119, %p120
      %p122 = scmp.ne.s32.totalorder %s114, %s116
      %p123 = scmp.eq.s32.totalorder %s22, 1
      %p124 = por %p122, %p123
      %p125 = scmp.ne.s32.totalorder %s116, %s117
      %p126 = scmp.eq.s32.totalorder %s22, 0
      %p127 = por %p125, %p126
      %p128 = scmp.ne.s32.totalorder %s116, %s117
      %p129 = scmp.eq.s32.totalorder %s23, 1
      %p130 = por %p128, %p129
      %p132 = scmp.ne.s32.totalorder %s117, %s131
      %p133 = scmp.eq.s32.totalorder %s23, 0
      %p134 = por %p132, %p133
      %s136 = sadd.s32 %s135, 1
      %p139 = scmp.eq.s32.totalorder %s17, 1
      %p140 = scmp.ne.s32.totalorder %s135, %s137
      %p141 = scmp.eq.s32.totalorder %s17, 0
      %p142 = por %p140, %p141
      %p143 = scmp.ne.s32.totalorder %s135, %s137
      %p144 = scmp.eq.s32.totalorder %s22, 1
      %p145 = por %p143, %p144
      %p146 = scmp.ne.s32.totalorder %s137, %s138
      %p147 = scmp.eq.s32.totalorder %s22, 0
      %p148 = por %p146, %p147
      %p149 = scmp.ne.s32.totalorder %s137, %s138
      %p150 = scmp.eq.s32.totalorder %s23, 1
      %p151 = por %p149, %p150
      %p153 = scmp.ne.s32.totalorder %s138, %s152
      %p154 = scmp.eq.s32.totalorder %s23, 0
      %p155 = por %p153, %p154
      %s157 = sadd.s32 %s156, 1
      %p160 = scmp.eq.s32.totalorder %s17, 1
      %p161 = scmp.ne.s32.totalorder %s156, %s158
      %p162 = scmp.eq.s32.totalorder %s17, 0
      %p163 = por %p161, %p162
      %p164 = scmp.ne.s32.totalorder %s156, %s158
      %p165 = scmp.eq.s32.totalorder %s22, 1
      %p166 = por %p164, %p165
      %p167 = scmp.ne.s32.totalorder %s158, %s159
      %p168 = scmp.eq.s32.totalorder %s22, 0
      %p169 = por %p167, %p168
      %p170 = scmp.ne.s32.totalorder %s158, %s159
      %p171 = scmp.eq.s32.totalorder %s23, 1
      %p172 = por %p170, %p171
      %p174 = scmp.ne.s32.totalorder %s159, %s173
      %p175 = scmp.eq.s32.totalorder %s23, 0
      %p176 = por %p174, %p175
      %s177 = ssub.s32 %s17, %s24
      %p178 = scmp.eq.s32.totalorder %s177, 0
      %s180 = sadd.s32 %s179, 1
      %s181 = scalar_select %p178, %s179, %s180
      %p184 = pneg %p178
      %p185 = scmp.eq.s32.totalorder %s17, 1
      %p186 = por %p184, %p185
      %p187 = scmp.ne.s32.totalorder %s179, %s182
      %p188 = scmp.eq.s32.totalorder %s17, 0
      %p189 = por %p187, %p188
      %p190 = scmp.ne.s32.totalorder %s179, %s182
      %p191 = scmp.eq.s32.totalorder %s22, 1
      %p192 = por %p190, %p191
      %p193 = scmp.ne.s32.totalorder %s182, %s183
      %p194 = scmp.eq.s32.totalorder %s22, 0
      %p195 = por %p193, %p194
      %p196 = scmp.ne.s32.totalorder %s182, %s183
      %p197 = scmp.eq.s32.totalorder %s23, 1
      %p198 = por %p196, %p197
      %p200 = scmp.ne.s32.totalorder %s183, %s199
      %p201 = scmp.eq.s32.totalorder %s23, 0
      %p202 = por %p200, %p201
      %p203 = scmp.le.s32.totalorder 1, %s17
      %p204 = scmp.lt.s32.totalorder %s17, 3
      %p205 = pnand %p203, %p204
      %p206 = pneg %p205
      // Predicated region
      $region9: #{tpu_custom_call.1} parent=5 // pred_check
        _
      $region10: #{tpu_custom_call.1} parent=5 // pred_check_branch
        %208 = sbr.rel (%p205) target = $region12
      $region11: #{tpu_custom_call.1} parent=5 // pred_region
        %s209 = ssub.s32 %s17, 1
        // Predicated region
        $region13: #{tpu_custom_call.1} parent=11 // pred_check
          %p210 = pneg %p64
        $region14: #{tpu_custom_call.1} parent=11 // pred_check_branch
          %212 = sbr.rel (%p210) target = $region16
        $region15: #{tpu_custom_call.1} parent=11 // pred_region
          %s214 = ssub.s32 14592, 14592
          %215 = vsyncadd [#allocation5], %s214
          %s216 = sshll.u32 [#allocation4], 4
          %s217 = int_to_ptr.vmem [resolvable:$true] %s216
          %222 = dma.hbm_to_vmem [thread:$0]  %s1, 14592, %s217, [#allocation5], 128, 128, 8
        $region16: #{tpu_custom_call.1} parent=11 // pred_fallthru
          _
        // Predicated region
        $region17: #{tpu_custom_call.1} parent=11 // pred_check
          %p223 = pneg %p85
        $region18: #{tpu_custom_call.1} parent=11 // pred_check_branch
          %225 = sbr.rel (%p223) target = $region20
        $region19: #{tpu_custom_call.1} parent=11 // pred_region
          _
        $region20: #{tpu_custom_call.1} parent=11 // pred_fallthru
          _
        // Predicated region
        $region21: #{tpu_custom_call.1} parent=11 // pred_check
          %p226 = pneg %p106
        $region22: #{tpu_custom_call.1} parent=11 // pred_check_branch
          %228 = sbr.rel (%p226) target = $region24
        $region23: #{tpu_custom_call.1} parent=11 // pred_region
          _
        $region24: #{tpu_custom_call.1} parent=11 // pred_fallthru
          _
        // Predicated region
        $region25: #{tpu_custom_call.1} parent=11 // pred_check
          %p229 = pneg %p127
        $region26: #{tpu_custom_call.1} parent=11 // pred_check_branch
          %231 = sbr.rel (%p229) target = $region28
        $region27: #{tpu_custom_call.1} parent=11 // pred_region
          _
        $region28: #{tpu_custom_call.1} parent=11 // pred_fallthru
          _
        // Predicated region
        $region29: #{tpu_custom_call.1} parent=11 // pred_check
          %p232 = pneg %p148
        $region30: #{tpu_custom_call.1} parent=11 // pred_check_branch
          %234 = sbr.rel (%p232) target = $region32
        $region31: #{tpu_custom_call.1} parent=11 // pred_region
          _
        $region32: #{tpu_custom_call.1} parent=11 // pred_fallthru
          _
        // Predicated region
        $region33: #{tpu_custom_call.1} parent=11 // pred_check
          %p235 = pneg %p169
        $region34: #{tpu_custom_call.1} parent=11 // pred_check_branch
          %237 = sbr.rel (%p235) target = $region36
        $region35: #{tpu_custom_call.1} parent=11 // pred_region
          _
        $region36: #{tpu_custom_call.1} parent=11 // pred_fallthru
          _
      $region12: #{tpu_custom_call.1} parent=5 // pred_fallthru
        _
      %p238 = scmp.lt.s32.totalorder %s17, 2
      // Predicated region
      $region37: #{tpu_custom_call.1} parent=5 // pred_check
        %p239 = pneg %p238
      $region38: #{tpu_custom_call.1} parent=5 // pred_check_branch
        %241 = sbr.rel (%p239) target = $region40
      $region39: #{tpu_custom_call.1} parent=5 // pred_region
        // Predicated region
        $region41: #{tpu_custom_call.1} parent=39 // pred_check
          %p242 = pneg %p37
        $region42: #{tpu_custom_call.1} parent=39 // pred_check_branch
          %244 = sbr.rel (%p242) target = $region44
        $region43: #{tpu_custom_call.1} parent=39 // pred_region
          %s245 = sand.u32 %s27, 1
          %s246 = scalar_lea.sflag [#allocation3], %s245
          %s247 = sand.u32 %s27, 1
          %s248 = smul.addr %s247, 384
          %s249 = scalar_lea.vmem [#allocation2], %s248
          %s250 = smul.u32 8, %s17
          %s251 = ssub.s32 13, %s250
          %p252 = scmp.lt.s32.totalorder %s251, 8
          %s253 = scalar_select %p252, %s251, 8
          %s254 = smul.u32 128, %s253
          %s255 = smul.u32 %s254, 2
          %s256 = smul.u32 %s255, 3
          %s258 = ssub.s32 6144, %s256
          %259 = vsyncadd %s246, %s258
          %p260 = scmp.ne.s32.totalorder 0, %s256
          %s261 = smul.addr %s250, 6
          %s262 = smul.addr %s261, 128
          %s263 = scalar_lea.hbm %s0, %s262
          %s264 = smul.u32 %s253, 2
          %s265 = smul.u32 24, %s264
          %s266 = sshll.u32 %s249, 4
          %s267 = int_to_ptr.vmem [resolvable:$true] %s266
          %s268 = sshll.u32 %s265, 4
          %272 = dma.hbm_to_vmem [thread:$0]  (%p260), %s263, %s268, %s267, %s246, 384, 384, 24
        $region44: #{tpu_custom_call.1} parent=39 // pred_fallthru
          _
      $region40: #{tpu_custom_call.1} parent=5 // pred_fallthru
        _
      %p273 = scmp.le.s32.totalorder 1, %s17
      %p274 = scmp.lt.s32.totalorder %s17, 3
      %p275 = pnand %p273, %p274
      %p276 = pneg %p275
      // Predicated region
      $region45: #{tpu_custom_call.1} parent=5 // pred_check
        _
      $region46: #{tpu_custom_call.1} parent=5 // pred_check_branch
        %278 = sbr.rel (%p275) target = $region48
      $region47: #{tpu_custom_call.1} parent=5 // pred_region
        %s279 = ssub.s32 %s17, 1
        %s280 = sand.u32 %s30, 1
        %s281 = scalar_lea.sflag [#allocation3], %s280
        %s282 = sand.u32 %s30, 1
        %s283 = smul.addr %s282, 384
        %s284 = scalar_lea.vmem [#allocation2], %s283
        // Predicated region
        $region49: #{tpu_custom_call.1} parent=47 // pred_check
          %p285 = pneg %p43
        $region50: #{tpu_custom_call.1} parent=47 // pred_check_branch
          %287 = sbr.rel (%p285) target = $region52
        $region51: #{tpu_custom_call.1} parent=47 // pred_region
          %288 = dma.done %s281, 6144
        $region52: #{tpu_custom_call.1} parent=47 // pred_fallthru
          _
        // Predicated region
        $region53: #{tpu_custom_call.1} parent=47 // pred_check
          %p289 = pneg %p64
        $region54: #{tpu_custom_call.1} parent=47 // pred_check_branch
          %291 = sbr.rel (%p289) target = $region56
        $region55: #{tpu_custom_call.1} parent=47 // pred_region
          %292 = dma.done [#allocation5], 14592
        $region56: #{tpu_custom_call.1} parent=47 // pred_fallthru
          _
        %s293 = sand.u32 %s30, 1
        %s294 = scalar_lea.sflag [#allocation3], %s293
        %s295 = sand.u32 %s30, 1
        %s296 = smul.addr %s295, 384
        %s297 = scalar_lea.vmem [#allocation2], %s296
        %p298 = pneg %p43
        %p299 = pneg %p40
        %p300 = pneg %p64
        %p301 = pneg %p61
        %p302 = pneg %p85
        %p303 = pneg %p82
        %p304 = pneg %p106
        %p305 = pneg %p103
        %p306 = pneg %p127
        %p307 = pneg %p124
        %p308 = pneg %p148
        %p309 = pneg %p145
        %p310 = pneg %p169
        %p311 = pneg %p166
        %p312 = pneg %p195
        %p313 = pneg %p192
        %p314 = scmp.lt.s32.totalorder %s22, 1
        %s315 = scalar_select %p314, %s22, 1
        %s316 = smul.addr %s315, 8
        %s317 = scalar_lea.vmem %s7, %s316
        %s318 = smul.u32 8, %s22
        %s319 = ssub.s32 13, %s318
        %p320 = scmp.lt.s32.totalorder %s319, 8
        %s321 = scalar_select %p320, %s319, 8
        %s322 = smul.u32 128, %s321
        %s323 = smul.u32 %s322, 2
        %s324 = smul.u32 %s323, 3
        %p325 = scmp.lt.s32.totalorder %s22, 1
        %s326 = scalar_select %p325, %s22, 1
        %s327 = smul.addr %s326, 8
        %s328 = scalar_lea.vmem %s7, %s327
        %v330 = vld [vmem:[%s2] sm:$0x3]
        %v331 = vld [vmem:[%s284] sm:$0xff]
        %v332 = vld [vmem:[%s284 + $0x8] sm:$0xff]
        %v333 = vld [vmem:[%s284 + $0x10] sm:$0xff]
        %v334 = vld [vmem:[%s284 + $0x18] sm:$0xff]
        %v335 = vld [vmem:[%s284 + $0x20] sm:$0xff]
        %v336 = vld [vmem:[%s284 + $0x28] sm:$0xff]
        %v337 = vld [vmem:[%s284 + $0x30] sm:$0xff]
        %v338 = vld [vmem:[%s284 + $0x38] sm:$0xff]
        %v339 = vld [vmem:[%s284 + $0x40] sm:$0xff]
        %v340 = vld [vmem:[%s284 + $0x48] sm:$0xff]
        %v341 = vld [vmem:[%s284 + $0x50] sm:$0xff]
        %v342 = vld [vmem:[%s284 + $0x58] sm:$0xff]
        %v343 = vld [vmem:[%s284 + $0x60] sm:$0xff]
        %v344 = vld [vmem:[%s284 + $0x68] sm:$0xff]
        %v345 = vld [vmem:[%s284 + $0x70] sm:$0xff]
        %v346 = vld [vmem:[%s284 + $0x78] sm:$0xff]
        %v347 = vld [vmem:[%s284 + $0x80] sm:$0xff]
        %v348 = vld [vmem:[%s284 + $0x88] sm:$0xff]
        %v349 = vld [vmem:[%s284 + $0x90] sm:$0xff]
        %v350 = vld [vmem:[%s284 + $0x98] sm:$0xff]
        %v351 = vld [vmem:[%s284 + $0xa0] sm:$0xff]
        %v352 = vld [vmem:[%s284 + $0xa8] sm:$0xff]
        %v353 = vld [vmem:[%s284 + $0xb0] sm:$0xff]
        %v354 = vld [vmem:[%s284 + $0xb8] sm:$0xff]
        %v355 = vld [vmem:[%s284 + $0xc0] sm:$0xff]
        %v356 = vld [vmem:[%s284 + $0xc8] sm:$0xff]
        %v357 = vld [vmem:[%s284 + $0xd0] sm:$0xff]
        %v358 = vld [vmem:[%s284 + $0xd8] sm:$0xff]
        %v359 = vld [vmem:[%s284 + $0xe0] sm:$0xff]
        %v360 = vld [vmem:[%s284 + $0xe8] sm:$0xff]
        %v361 = vld [vmem:[%s284 + $0xf0] sm:$0xff]
        %v362 = vld [vmem:[%s284 + $0xf8] sm:$0xff]
        %v363 = vld [vmem:[%s284 + $0x100] sm:$0xff]
        %v364 = vld [vmem:[%s284 + $0x108] sm:$0xff]
        %v365 = vld [vmem:[%s284 + $0x110] sm:$0xff]
        %v366 = vld [vmem:[%s284 + $0x118] sm:$0xff]
        %v367 = vld [vmem:[%s284 + $0x120] sm:$0xff]
        %v368 = vld [vmem:[%s284 + $0x128] sm:$0xff]
        %v369 = vld [vmem:[%s284 + $0x130] sm:$0xff]
        %v370 = vld [vmem:[%s284 + $0x138] sm:$0xff]
        %v371 = vld [vmem:[%s284 + $0x140] sm:$0xff]
        %v372 = vld [vmem:[%s284 + $0x148] sm:$0xff]
        %v373 = vld [vmem:[%s284 + $0x150] sm:$0xff]
        %v374 = vld [vmem:[%s284 + $0x158] sm:$0xff]
        %v375 = vld [vmem:[%s284 + $0x160] sm:$0xff]
        %v376 = vld [vmem:[%s284 + $0x168] sm:$0xff]
        %v377 = vld [vmem:[%s284 + $0x170] sm:$0xff]
        %v378 = vld [vmem:[%s284 + $0x178] sm:$0xff]
        %v379 = vpack.c.bf16 %v334, %v331
        %v380 = vpack.c.bf16 %v335, %v332
        %v381 = vpack.c.bf16 %v336, %v333
        %v382 = vpack.c.bf16 %v340, %v337
        %v383 = vpack.c.bf16 %v341, %v338
        %v384 = vpack.c.bf16 %v342, %v339
        %v385 = vpack.c.bf16 %v346, %v343
        %v386 = vpack.c.bf16 %v347, %v344
        %v387 = vpack.c.bf16 %v348, %v345
        %v388 = vpack.c.bf16 %v352, %v349
        %v389 = vpack.c.bf16 %v353, %v350
        %v390 = vpack.c.bf16 %v354, %v351
        %v391 = vpack.c.bf16 %v358, %v355
        %v392 = vpack.c.bf16 %v359, %v356
        %v393 = vpack.c.bf16 %v360, %v357
        %v394 = vpack.c.bf16 %v364, %v361
        %v395 = vpack.c.bf16 %v365, %v362
        %v396 = vpack.c.bf16 %v366, %v363
        %v397 = vpack.c.bf16 %v370, %v367
        %v398 = vpack.c.bf16 %v371, %v368
        %v399 = vpack.c.bf16 %v372, %v369
        %v400 = vpack.c.bf16 %v376, %v373
        %v401 = vpack.c.bf16 %v377, %v374
        %v402 = vpack.c.bf16 %v378, %v375
        %v404 = vlaneseq
        %v405 = vshrl.u32 %v404, 7
        %v406 = vsub.s32 0, %v405
        %v407 = vrot.slane %v330, %v406
        %v408 = vlaneseq
        %v409 = vshrl.u32 %v408, 7
        %v410 = vsub.s32 1, %v409
        %v411 = vrot.slane %v330, %v410
        %v414 = vld [vmem:[#allocation4] sm:$0xff]
        %v415 = vld [vmem:[#allocation4 + $0x8] sm:$0xff]
        %v416 = vld [vmem:[#allocation4 + $0x10] sm:$0xff]
        %v417 = vld [vmem:[#allocation4 + $0x18] sm:$0xff]
        %v418 = vld [vmem:[#allocation4 + $0x20] sm:$0xff]
        %v419 = vld [vmem:[#allocation4 + $0x28] sm:$0xff]
        %v420 = vld [vmem:[#allocation4 + $0x30] sm:$0xff]
        %v421 = vld [vmem:[#allocation4 + $0x38] sm:$0xff]
        %v422 = vld [vmem:[#allocation4 + $0x40] sm:$0xff]
        %v423 = vld [vmem:[#allocation4 + $0x48] sm:$0xff]
        %v424 = vld [vmem:[#allocation4 + $0x50] sm:$0xff]
        %v425 = vld [vmem:[#allocation4 + $0x58] sm:$0xff]
        %v426 = vld [vmem:[#allocation4 + $0x60] sm:$0xff]
        %v427 = vld [vmem:[#allocation4 + $0x68] sm:$0xff]
        %v428 = vld [vmem:[#allocation4 + $0x70] sm:$0xff]
        %v429 = vld [vmem:[#allocation4 + $0x78] sm:$0xff]
        %v430 = vld [vmem:[#allocation4 + $0x80] sm:$0xff]
        %v431 = vld [vmem:[#allocation4 + $0x88] sm:$0xff]
        %v432 = vld [vmem:[#allocation4 + $0x90] sm:$0xff]
        %v433 = vld [vmem:[#allocation4 + $0x98] sm:$0xff]
        %v434 = vld [vmem:[#allocation4 + $0xa0] sm:$0xff]
        %v435 = vld [vmem:[#allocation4 + $0xa8] sm:$0xff]
        %v436 = vld [vmem:[#allocation4 + $0xb0] sm:$0xff]
        %v437 = vld [vmem:[#allocation4 + $0xb8] sm:$0xff]
        %v438 = vld [vmem:[#allocation4 + $0xc0] sm:$0xff]
        %v439 = vld [vmem:[#allocation4 + $0xc8] sm:$0xff]
        %v440 = vld [vmem:[#allocation4 + $0xd0] sm:$0xff]
        %v441 = vld [vmem:[#allocation4 + $0xd8] sm:$0xff]
        %v442 = vld [vmem:[#allocation4 + $0xe0] sm:$0xff]
        %v443 = vld [vmem:[#allocation4 + $0xe8] sm:$0xff]
        %v444 = vld [vmem:[#allocation4 + $0xf0] sm:$0xff]
        %v445 = vld [vmem:[#allocation4 + $0xf8] sm:$0xff]
        %v446 = vld [vmem:[#allocation4 + $0x100] sm:$0xff]
        %v447 = vld [vmem:[#allocation4 + $0x108] sm:$0xff]
        %v448 = vld [vmem:[#allocation4 + $0x110] sm:$0xff]
        %v449 = vld [vmem:[#allocation4 + $0x118] sm:$0xff]
        %v450 = vld [vmem:[#allocation4 + $0x120] sm:$0xff]
        %v451 = vld [vmem:[#allocation4 + $0x128] sm:$0x33]
        %v490 = vunpack.c.l.b16 %v414
        %v491 = vunpack.c.h.b16 %v414
        %v492 = vunpack.c.l.b16 %v415
        %v493 = vunpack.c.h.b16 %v415
        %v494 = vunpack.c.l.b16 %v416
        %v495 = vunpack.c.h.b16 %v416
        %v496 = vunpack.c.l.b16 %v417
        %v497 = vunpack.c.h.b16 %v417
        %v498 = vunpack.c.l.b16 %v418
        %v499 = vunpack.c.h.b16 %v418
        %v500 = vunpack.c.l.b16 %v419
        %v501 = vunpack.c.h.b16 %v419
        %v502 = vunpack.c.l.b16 %v420
        %v503 = vunpack.c.h.b16 %v420
        %v504 = vunpack.c.l.b16 %v421
        %v505 = vunpack.c.h.b16 %v421
        %v506 = vunpack.c.l.b16 %v422
        %v507 = vunpack.c.h.b16 %v422
        %v508 = vunpack.c.l.b16 %v423
        %v509 = vunpack.c.h.b16 %v423
        %v510 = vunpack.c.l.b16 %v424
        %v511 = vunpack.c.h.b16 %v424
        %v512 = vunpack.c.l.b16 %v425
        %v513 = vunpack.c.h.b16 %v425
        %v514 = vunpack.c.l.b16 %v426
        %v515 = vunpack.c.h.b16 %v426
        %v516 = vunpack.c.l.b16 %v427
        %v517 = vunpack.c.h.b16 %v427
        %v518 = vunpack.c.l.b16 %v428
        %v519 = vunpack.c.h.b16 %v428
        %v520 = vunpack.c.l.b16 %v429
        %v521 = vunpack.c.h.b16 %v429
        %v522 = vunpack.c.l.b16 %v430
        %v523 = vunpack.c.h.b16 %v430
        %v524 = vunpack.c.l.b16 %v431
        %v525 = vunpack.c.h.b16 %v431
        %v526 = vunpack.c.l.b16 %v432
        %v527 = vunpack.c.h.b16 %v432
        %v528 = vunpack.c.l.b16 %v433
        %v529 = vunpack.c.h.b16 %v433
        %v530 = vunpack.c.l.b16 %v434
        %v531 = vunpack.c.h.b16 %v434
        %v532 = vunpack.c.l.b16 %v435
        %v533 = vunpack.c.h.b16 %v435
        %v534 = vunpack.c.l.b16 %v436
        %v535 = vunpack.c.h.b16 %v436
        %v536 = vunpack.c.l.b16 %v437
        %v537 = vunpack.c.h.b16 %v437
        %v538 = vunpack.c.l.b16 %v438
        %v539 = vunpack.c.h.b16 %v438
        %v540 = vunpack.c.l.b16 %v439
        %v541 = vunpack.c.h.b16 %v439
        %v542 = vunpack.c.l.b16 %v440
        %v543 = vunpack.c.h.b16 %v440
        %v544 = vunpack.c.l.b16 %v441
        %v545 = vunpack.c.h.b16 %v441
        %v546 = vunpack.c.l.b16 %v442
        %v547 = vunpack.c.h.b16 %v442
        %v548 = vunpack.c.l.b16 %v443
        %v549 = vunpack.c.h.b16 %v443
        %v550 = vunpack.c.l.b16 %v444
        %v551 = vunpack.c.h.b16 %v444
        %v552 = vunpack.c.l.b16 %v445
        %v553 = vunpack.c.h.b16 %v445
        %v554 = vunpack.c.l.b16 %v446
        %v555 = vunpack.c.h.b16 %v446
        %v556 = vunpack.c.l.b16 %v447
        %v557 = vunpack.c.h.b16 %v447
        %v558 = vunpack.c.l.b16 %v448
        %v559 = vunpack.c.h.b16 %v448
        %v560 = vunpack.c.l.b16 %v449
        %v561 = vunpack.c.h.b16 %v449
        %v562 = vunpack.c.l.b16 %v450
        %v563 = vunpack.c.h.b16 %v450
        %v564 = vunpack.c.l.b16 %v451
        %v565 = vunpack.c.h.b16 %v451
        %v566 = vpack.c.b16 %v492, %v490
        %v567 = vpack.c.b16 %v493, %v491
        %v568 = vpack.c.b16 %v496, %v494
        %v569 = vpack.c.b16 %v497, %v495
        %v570 = vpack.c.b16 %v500, %v498
        %v571 = vpack.c.b16 %v501, %v499
        %v572 = vpack.c.b16 %v504, %v502
        %v573 = vpack.c.b16 %v505, %v503
        %v574 = vpack.c.b16 %v508, %v506
        %v575 = vpack.c.b16 %v509, %v507
        %v576 = vpack.c.b16 %v512, %v510
        %v577 = vpack.c.b16 %v513, %v511
        %v578 = vpack.c.b16 %v516, %v514
        %v579 = vpack.c.b16 %v517, %v515
        %v580 = vpack.c.b16 %v520, %v518
        %v581 = vpack.c.b16 %v521, %v519
        %v582 = vpack.c.b16 %v524, %v522
        %v583 = vpack.c.b16 %v525, %v523
        %v584 = vpack.c.b16 %v528, %v526
        %v585 = vpack.c.b16 %v529, %v527
        %v586 = vpack.c.b16 %v532, %v530
        %v587 = vpack.c.b16 %v533, %v531
        %v588 = vpack.c.b16 %v536, %v534
        %v589 = vpack.c.b16 %v537, %v535
        %v590 = vpack.c.b16 %v540, %v538
        %v591 = vpack.c.b16 %v541, %v539
        %v592 = vpack.c.b16 %v544, %v542
        %v593 = vpack.c.b16 %v545, %v543
        %v594 = vpack.c.b16 %v548, %v546
        %v595 = vpack.c.b16 %v549, %v547
        %v596 = vpack.c.b16 %v552, %v550
        %v597 = vpack.c.b16 %v553, %v551
        %v598 = vpack.c.b16 %v556, %v554
        %v599 = vpack.c.b16 %v557, %v555
        %v600 = vpack.c.b16 %v560, %v558
        %v601 = vpack.c.b16 %v561, %v559
        %v602 = vpack.c.b16 %v564, %v562
        %v603 = vpack.c.b16 %v565, %v563
        %vm640 = vcmask 359424
        %v642 = vsel %vm640, %v381, 0
        %v645 = vsel %vm640, %v384, 0
        %v648 = vsel %vm640, %v387, 0
        %v651 = vsel %vm640, %v390, 0
        %v654 = vsel %vm640, %v393, 0
        %v657 = vsel %vm640, %v396, 0
        %v660 = vsel %vm640, %v399, 0
        %v663 = vsel %vm640, %v402, 0
        %vm665 = vcmask 1045504
        %v667 = vsel %vm665, %v602, 0
        %v670 = vsel %vm665, %v603, 0
        %672 = vmatprep.subr.bf16.mxu0 %v567
        %673 = vmatpush1.bf16.msra.mxu0 %v566
        %674 = vmatprep.subr.bf16.mxu0 %v569
        %675 = vmatpush1.bf16.msra.mxu0 %v568
        %676 = vmatprep.subr.bf16.mxu0 %v571
        %677 = vmatpush1.bf16.msra.mxu0 %v570
        %678 = vmatprep.subr.bf16.mxu0 %v573
        %679 = vmatpush1.bf16.msra.mxu0 %v572
        %680 = vmatprep.subr.bf16.mxu0 %v575
        %681 = vmatpush1.bf16.msra.mxu0 %v574
        %682 = vmatprep.subr.bf16.mxu0 %v577
        %683 = vmatpush1.bf16.msra.mxu0 %v576
        %684 = vmatprep.subr.bf16.mxu0 %v579
        %685 = vmatpush1.bf16.msra.mxu0 %v578
        %686 = vmatprep.subr.bf16.mxu0 %v581
        %687 = vmatpush1.bf16.msra.mxu0 %v580
        %688 = vmatprep.subr.bf16.mxu0 %v583
        %689 = vmatpush1.bf16.msra.mxu0 %v582
        %690 = vmatprep.subr.bf16.mxu0 %v585
        %691 = vmatpush1.bf16.msra.mxu0 %v584
        %692 = vmatprep.subr.bf16.mxu0 %v587
        %693 = vmatpush1.bf16.msra.mxu0 %v586
        %694 = vmatprep.subr.bf16.mxu0 %v589
        %695 = vmatpush1.bf16.msra.mxu0 %v588
        %696 = vmatprep.subr.bf16.mxu0 %v591
        %697 = vmatpush1.bf16.msra.mxu0 %v590
        %698 = vmatprep.subr.bf16.mxu0 %v593
        %699 = vmatpush1.bf16.msra.mxu0 %v592
        %700 = vmatprep.subr.bf16.mxu0 %v595
        %701 = vmatpush1.bf16.msra.mxu0 %v594
        %702 = vmatprep.subr.bf16.mxu0 %v597
        %703 = vmatpush1.bf16.msra.mxu0 %v596
        %704 = vmatprep.mubr.bf16.mxu0 %v380
        %705 = vmatmul.mubr.bf16.gmra.mrb[0].mxu0 %v379
        %v706 = vpop.f32.mrb[0].mxu0
        %v707 = vadd.f32 0.0, %v706
        %v708 = vpop.f32.mrb[0].mxu0
        %v709 = vadd.f32 0.0, %v708
        %v710 = vpop.f32.mrb[0].mxu0
        %v711 = vadd.f32 0.0, %v710
        %v712 = vpop.f32.mrb[0].mxu0
        %v713 = vadd.f32 0.0, %v712
        %714 = vmatprep.mubr.bf16.mxu0 %v383
        %715 = vmatmul.mubr.bf16.gmra.mrb[0].mxu0 %v382
        %v716 = vpop.f32.mrb[0].mxu0
        %v717 = vadd.f32 0.0, %v716
        %v718 = vpop.f32.mrb[0].mxu0
        %v719 = vadd.f32 0.0, %v718
        %v720 = vpop.f32.mrb[0].mxu0
        %v721 = vadd.f32 0.0, %v720
        %v722 = vpop.f32.mrb[0].mxu0
        %v723 = vadd.f32 0.0, %v722
        %724 = vmatprep.mubr.bf16.mxu0 %v386
        %725 = vmatmul.mubr.bf16.gmra.mrb[0].mxu0 %v385
        %v726 = vpop.f32.mrb[0].mxu0
        %v727 = vadd.f32 0.0, %v726
        %v728 = vpop.f32.mrb[0].mxu0
        %v729 = vadd.f32 0.0, %v728
        %v730 = vpop.f32.mrb[0].mxu0
        %v731 = vadd.f32 0.0, %v730
        %v732 = vpop.f32.mrb[0].mxu0
        %v733 = vadd.f32 0.0, %v732
        %734 = vmatprep.mubr.bf16.mxu0 %v389
        %735 = vmatmul.mubr.bf16.gmra.mrb[0].mxu0 %v388
        %v736 = vpop.f32.mrb[0].mxu0
        %v737 = vadd.f32 0.0, %v736
        %v738 = vpop.f32.mrb[0].mxu0
        %v739 = vadd.f32 0.0, %v738
        %v740 = vpop.f32.mrb[0].mxu0
        %v741 = vadd.f32 0.0, %v740
        %v742 = vpop.f32.mrb[0].mxu0
        %v743 = vadd.f32 0.0, %v742
        %744 = vmatprep.mubr.bf16.mxu0 %v392
        %745 = vmatmul.mubr.bf16.gmra.mrb[0].mxu0 %v391
        %v746 = vpop.f32.mrb[0].mxu0
        %v747 = vadd.f32 0.0, %v746
        %v748 = vpop.f32.mrb[0].mxu0
        %v749 = vadd.f32 0.0, %v748
        %v750 = vpop.f32.mrb[0].mxu0
        %v751 = vadd.f32 0.0, %v750
        %v752 = vpop.f32.mrb[0].mxu0
        %v753 = vadd.f32 0.0, %v752
        %754 = vmatprep.mubr.bf16.mxu0 %v395
        %755 = vmatmul.mubr.bf16.gmra.mrb[0].mxu0 %v394
        %v756 = vpop.f32.mrb[0].mxu0
        %v757 = vadd.f32 0.0, %v756
        %v758 = vpop.f32.mrb[0].mxu0
        %v759 = vadd.f32 0.0, %v758
        %v760 = vpop.f32.mrb[0].mxu0
        %v761 = vadd.f32 0.0, %v760
        %v762 = vpop.f32.mrb[0].mxu0
        %v763 = vadd.f32 0.0, %v762
        %764 = vmatprep.mubr.bf16.mxu0 %v398
        %765 = vmatmul.mubr.bf16.gmra.mrb[0].mxu0 %v397
        %v766 = vpop.f32.mrb[0].mxu0
        %v767 = vadd.f32 0.0, %v766
        %v768 = vpop.f32.mrb[0].mxu0
        %v769 = vadd.f32 0.0, %v768
        %v770 = vpop.f32.mrb[0].mxu0
        %v771 = vadd.f32 0.0, %v770
        %v772 = vpop.f32.mrb[0].mxu0
        %v773 = vadd.f32 0.0, %v772
        %774 = vmatprep.mubr.bf16.mxu0 %v401
        %775 = vmatmul.mubr.bf16.gmra.mrb[0].mxu0 %v400
        %v776 = vpop.f32.mrb[0].mxu0
        %v777 = vadd.f32 0.0, %v776
        %v778 = vpop.f32.mrb[0].mxu0
        %v779 = vadd.f32 0.0, %v778
        %v780 = vpop.f32.mrb[0].mxu0
        %v781 = vadd.f32 0.0, %v780
        %v782 = vpop.f32.mrb[0].mxu0
        %v783 = vadd.f32 0.0, %v782
        %784 = vdwg.mxu0
        %785 = vmatprep.subr.bf16.mxu0 %v599
        %786 = vmatpush1.bf16.msra.mxu0 %v598
        %787 = vmatprep.subr.bf16.mxu0 %v601
        %788 = vmatpush1.bf16.msra.mxu0 %v600
        %789 = vmatprep.subr.bf16.mxu0 %v670
        %790 = vmatpush1.bf16.msra.mxu0 %v667
        %791 = vmatprep.subr.bf16.mxu0 0
        %792 = vmatpush1.bf16.msra.mxu0 0
        %793 = vmatprep.subr.bf16.mxu0 0
        %794 = vmatpush1.bf16.msra.mxu0 0
        %795 = vmatprep.subr.bf16.mxu0 0
        %796 = vmatpush1.bf16.msra.mxu0 0
        %797 = vmatprep.subr.bf16.mxu0 0
        %798 = vmatpush1.bf16.msra.mxu0 0
        %799 = vmatprep.subr.bf16.mxu0 0
        %800 = vmatpush1.bf16.msra.mxu0 0
        %801 = vmatprep.subr.bf16.mxu0 0
        %802 = vmatpush1.bf16.msra.mxu0 0
        %803 = vmatprep.subr.bf16.mxu0 0
        %804 = vmatpush1.bf16.msra.mxu0 0
        %805 = vmatprep.subr.bf16.mxu0 0
        %806 = vmatpush1.bf16.msra.mxu0 0
        %807 = vmatprep.subr.bf16.mxu0 0
        %808 = vmatpush1.bf16.msra.mxu0 0
        %809 = vmatprep.subr.bf16.mxu0 0
        %810 = vmatpush1.bf16.msra.mxu0 0
        %811 = vmatprep.subr.bf16.mxu0 0
        %812 = vmatpush1.bf16.msra.mxu0 0
        %813 = vmatprep.subr.bf16.mxu0 0
        %814 = vmatpush1.bf16.msra.mxu0 0
        %815 = vmatprep.subr.bf16.mxu0 0
        %816 = vmatpush1.bf16.msra.mxu0 0
        %817 = vmatprep.mubr.bf16.mxu0 0
        %818 = vmatmul.mubr.bf16.gmra.mrb[0].mxu0 %v642
        %v819 = vpop.f32.mrb[0].mxu0
        %v820 = vadd.f32 %v707, %v819
        %v821 = vpop.f32.mrb[0].mxu0
        %v822 = vadd.f32 %v709, %v821
        %v823 = vpop.f32.mrb[0].mxu0
        %v824 = vadd.f32 %v711, %v823
        %v825 = vpop.f32.mrb[0].mxu0
        %v826 = vadd.f32 %v713, %v825
        %827 = vmatprep.mubr.bf16.mxu0 0
        %828 = vmatmul.mubr.bf16.gmra.mrb[0].mxu0 %v645
        %v829 = vpop.f32.mrb[0].mxu0
        %v830 = vadd.f32 %v717, %v829
        %v831 = vpop.f32.mrb[0].mxu0
        %v832 = vadd.f32 %v719, %v831
        %v833 = vpop.f32.mrb[0].mxu0
        %v834 = vadd.f32 %v721, %v833
        %v835 = vpop.f32.mrb[0].mxu0
        %v836 = vadd.f32 %v723, %v835
        %837 = vmatprep.mubr.bf16.mxu0 0
        %838 = vmatmul.mubr.bf16.gmra.mrb[0].mxu0 %v648
        %v839 = vpop.f32.mrb[0].mxu0
        %v840 = vadd.f32 %v727, %v839
        %v841 = vpop.f32.mrb[0].mxu0
        %v842 = vadd.f32 %v729, %v841
        %v843 = vpop.f32.mrb[0].mxu0
        %v844 = vadd.f32 %v731, %v843
        %v845 = vpop.f32.mrb[0].mxu0
        %v846 = vadd.f32 %v733, %v845
        %847 = vmatprep.mubr.bf16.mxu0 0
        %848 = vmatmul.mubr.bf16.gmra.mrb[0].mxu0 %v651
        %v849 = vpop.f32.mrb[0].mxu0
        %v850 = vadd.f32 %v737, %v849
        %v851 = vpop.f32.mrb[0].mxu0
        %v852 = vadd.f32 %v739, %v851
        %v853 = vpop.f32.mrb[0].mxu0
        %v854 = vadd.f32 %v741, %v853
        %v855 = vpop.f32.mrb[0].mxu0
        %v856 = vadd.f32 %v743, %v855
        %857 = vmatprep.mubr.bf16.mxu0 0
        %858 = vmatmul.mubr.bf16.gmra.mrb[0].mxu0 %v654
        %v859 = vpop.f32.mrb[0].mxu0
        %v860 = vadd.f32 %v747, %v859
        %v861 = vpop.f32.mrb[0].mxu0
        %v862 = vadd.f32 %v749, %v861
        %v863 = vpop.f32.mrb[0].mxu0
        %v864 = vadd.f32 %v751, %v863
        %v865 = vpop.f32.mrb[0].mxu0
        %v866 = vadd.f32 %v753, %v865
        %867 = vmatprep.mubr.bf16.mxu0 0
        %868 = vmatmul.mubr.bf16.gmra.mrb[0].mxu0 %v657
        %v869 = vpop.f32.mrb[0].mxu0
        %v870 = vadd.f32 %v757, %v869
        %v871 = vpop.f32.mrb[0].mxu0
        %v872 = vadd.f32 %v759, %v871
        %v873 = vpop.f32.mrb[0].mxu0
        %v874 = vadd.f32 %v761, %v873
        %v875 = vpop.f32.mrb[0].mxu0
        %v876 = vadd.f32 %v763, %v875
        %877 = vmatprep.mubr.bf16.mxu0 0
        %878 = vmatmul.mubr.bf16.gmra.mrb[0].mxu0 %v660
        %v879 = vpop.f32.mrb[0].mxu0
        %v880 = vadd.f32 %v767, %v879
        %v881 = vpop.f32.mrb[0].mxu0
        %v882 = vadd.f32 %v769, %v881
        %v883 = vpop.f32.mrb[0].mxu0
        %v884 = vadd.f32 %v771, %v883
        %v885 = vpop.f32.mrb[0].mxu0
        %v886 = vadd.f32 %v773, %v885
        %887 = vmatprep.mubr.bf16.mxu0 0
        %888 = vmatmul.mubr.bf16.gmra.mrb[0].mxu0 %v663
        %v889 = vpop.f32.mrb[0].mxu0
        %v890 = vadd.f32 %v777, %v889
        %v891 = vpop.f32.mrb[0].mxu0
        %v892 = vadd.f32 %v779, %v891
        %v893 = vpop.f32.mrb[0].mxu0
        %v894 = vadd.f32 %v781, %v893
        %v895 = vpop.f32.mrb[0].mxu0
        %v896 = vadd.f32 %v783, %v895
        %897 = vdwg.mxu0
        %v898 = vadd.f32 %v407, %v820
        %v899 = vadd.f32 %v411, %v822
        %v900 = vadd.f32 %v407, %v824
        %v901 = vadd.f32 %v411, %v826
        %v902 = vadd.f32 %v407, %v830
        %v903 = vadd.f32 %v411, %v832
        %v904 = vadd.f32 %v407, %v834
        %v905 = vadd.f32 %v411, %v836
        %v906 = vadd.f32 %v407, %v840
        %v907 = vadd.f32 %v411, %v842
        %v908 = vadd.f32 %v407, %v844
        %v909 = vadd.f32 %v411, %v846
        %v910 = vadd.f32 %v407, %v850
        %v911 = vadd.f32 %v411, %v852
        %v912 = vadd.f32 %v407, %v854
        %v913 = vadd.f32 %v411, %v856
        %v914 = vadd.f32 %v407, %v860
        %v915 = vadd.f32 %v411, %v862
        %v916 = vadd.f32 %v407, %v864
        %v917 = vadd.f32 %v411, %v866
        %v918 = vadd.f32 %v407, %v870
        %v919 = vadd.f32 %v411, %v872
        %v920 = vadd.f32 %v407, %v874
        %v921 = vadd.f32 %v411, %v876
        %v922 = vadd.f32 %v407, %v880
        %v923 = vadd.f32 %v411, %v882
        %v924 = vadd.f32 %v407, %v884
        %v925 = vadd.f32 %v411, %v886
        %v926 = vadd.f32 %v407, %v890
        %v927 = vadd.f32 %v411, %v892
        %v928 = vadd.f32 %v407, %v894
        %v929 = vadd.f32 %v411, %v896
        %s930 = scalar_lea.vmem [#allocation4], 304
        %v931 = vld [vmem:[%s930] sm:$0xff]
        %v932 = vld [vmem:[%s930 + $0x8] sm:$0xff]
        %v933 = vld [vmem:[%s930 + $0x10] sm:$0xff]
        %v934 = vld [vmem:[%s930 + $0x18] sm:$0xff]
        %v935 = vld [vmem:[%s930 + $0x20] sm:$0xff]
        %v936 = vld [vmem:[%s930 + $0x28] sm:$0xff]
        %v937 = vld [vmem:[%s930 + $0x30] sm:$0xff]
        %v938 = vld [vmem:[%s930 + $0x38] sm:$0xff]
        %v939 = vld [vmem:[%s930 + $0x40] sm:$0xff]
        %v940 = vld [vmem:[%s930 + $0x48] sm:$0xff]
        %v941 = vld [vmem:[%s930 + $0x50] sm:$0xff]
        %v942 = vld [vmem:[%s930 + $0x58] sm:$0xff]
        %v943 = vld [vmem:[%s930 + $0x60] sm:$0xff]
        %v944 = vld [vmem:[%s930 + $0x68] sm:$0xff]
        %v945 = vld [vmem:[%s930 + $0x70] sm:$0xff]
        %v946 = vld [vmem:[%s930 + $0x78] sm:$0xff]
        %v947 = vld [vmem:[%s930 + $0x80] sm:$0xff]
        %v948 = vld [vmem:[%s930 + $0x88] sm:$0xff]
        %v949 = vld [vmem:[%s930 + $0x90] sm:$0xff]
        %v950 = vld [vmem:[%s930 + $0x98] sm:$0xff]
        %v951 = vld [vmem:[%s930 + $0xa0] sm:$0xff]
        %v952 = vld [vmem:[%s930 + $0xa8] sm:$0xff]
        %v953 = vld [vmem:[%s930 + $0xb0] sm:$0xff]
        %v954 = vld [vmem:[%s930 + $0xb8] sm:$0xff]
        %v955 = vld [vmem:[%s930 + $0xc0] sm:$0xff]
        %v956 = vld [vmem:[%s930 + $0xc8] sm:$0xff]
        %v957 = vld [vmem:[%s930 + $0xd0] sm:$0xff]
        %v958 = vld [vmem:[%s930 + $0xd8] sm:$0xff]
        %v959 = vld [vmem:[%s930 + $0xe0] sm:$0xff]
        %v960 = vld [vmem:[%s930 + $0xe8] sm:$0xff]
        %v961 = vld [vmem:[%s930 + $0xf0] sm:$0xff]
        %v962 = vld [vmem:[%s930 + $0xf8] sm:$0xff]
        %v963 = vld [vmem:[%s930 + $0x100] sm:$0xff]
        %v964 = vld [vmem:[%s930 + $0x108] sm:$0xff]
        %v965 = vld [vmem:[%s930 + $0x110] sm:$0xff]
        %v966 = vld [vmem:[%s930 + $0x118] sm:$0xff]
        %v967 = vld [vmem:[%s930 + $0x120] sm:$0xff]
        %v968 = vld [vmem:[%s930 + $0x128] sm:$0x33]
        %v1007 = vunpack.c.l.b16 %v931
        %v1008 = vunpack.c.h.b16 %v931
        %v1009 = vunpack.c.l.b16 %v932
        %v1010 = vunpack.c.h.b16 %v932
        %v1011 = vunpack.c.l.b16 %v933
        %v1012 = vunpack.c.h.b16 %v933
        %v1013 = vunpack.c.l.b16 %v934
        %v1014 = vunpack.c.h.b16 %v934
        %v1015 = vunpack.c.l.b16 %v935
        %v1016 = vunpack.c.h.b16 %v935
        %v1017 = vunpack.c.l.b16 %v936
        %v1018 = vunpack.c.h.b16 %v936
        %v1019 = vunpack.c.l.b16 %v937
        %v1020 = vunpack.c.h.b16 %v937
        %v1021 = vunpack.c.l.b16 %v938
        %v1022 = vunpack.c.h.b16 %v938
        %v1023 = vunpack.c.l.b16 %v939
        %v1024 = vunpack.c.h.b16 %v939
        %v1025 = vunpack.c.l.b16 %v940
        %v1026 = vunpack.c.h.b16 %v940
        %v1027 = vunpack.c.l.b16 %v941
        %v1028 = vunpack.c.h.b16 %v941
        %v1029 = vunpack.c.l.b16 %v942
        %v1030 = vunpack.c.h.b16 %v942
        %v1031 = vunpack.c.l.b16 %v943
        %v1032 = vunpack.c.h.b16 %v943
        %v1033 = vunpack.c.l.b16 %v944
        %v1034 = vunpack.c.h.b16 %v944
        %v1035 = vunpack.c.l.b16 %v945
        %v1036 = vunpack.c.h.b16 %v945
        %v1037 = vunpack.c.l.b16 %v946
        %v1038 = vunpack.c.h.b16 %v946
        %v1039 = vunpack.c.l.b16 %v947
        %v1040 = vunpack.c.h.b16 %v947
        %v1041 = vunpack.c.l.b16 %v948
        %v1042 = vunpack.c.h.b16 %v948
        %v1043 = vunpack.c.l.b16 %v949
        %v1044 = vunpack.c.h.b16 %v949
        %v1045 = vunpack.c.l.b16 %v950
        %v1046 = vunpack.c.h.b16 %v950
        %v1047 = vunpack.c.l.b16 %v951
        %v1048 = vunpack.c.h.b16 %v951
        %v1049 = vunpack.c.l.b16 %v952
        %v1050 = vunpack.c.h.b16 %v952
        %v1051 = vunpack.c.l.b16 %v953
        %v1052 = vunpack.c.h.b16 %v953
        %v1053 = vunpack.c.l.b16 %v954
        %v1054 = vunpack.c.h.b16 %v954
        %v1055 = vunpack.c.l.b16 %v955
        %v1056 = vunpack.c.h.b16 %v955
        %v1057 = vunpack.c.l.b16 %v956
        %v1058 = vunpack.c.h.b16 %v956
        %v1059 = vunpack.c.l.b16 %v957
        %v1060 = vunpack.c.h.b16 %v957
        %v1061 = vunpack.c.l.b16 %v958
        %v1062 = vunpack.c.h.b16 %v958
        %v1063 = vunpack.c.l.b16 %v959
        %v1064 = vunpack.c.h.b16 %v959
        %v1065 = vunpack.c.l.b16 %v960
        %v1066 = vunpack.c.h.b16 %v960
        %v1067 = vunpack.c.l.b16 %v961
        %v1068 = vunpack.c.h.b16 %v961
        %v1069 = vunpack.c.l.b16 %v962
        %v1070 = vunpack.c.h.b16 %v962
        %v1071 = vunpack.c.l.b16 %v963
        %v1072 = vunpack.c.h.b16 %v963
        %v1073 = vunpack.c.l.b16 %v964
        %v1074 = vunpack.c.h.b16 %v964
        %v1075 = vunpack.c.l.b16 %v965
        %v1076 = vunpack.c.h.b16 %v965
        %v1077 = vunpack.c.l.b16 %v966
        %v1078 = vunpack.c.h.b16 %v966
        %v1079 = vunpack.c.l.b16 %v967
        %v1080 = vunpack.c.h.b16 %v967
        %v1081 = vunpack.c.l.b16 %v968
        %v1082 = vunpack.c.h.b16 %v968
        %v1083 = vpack.c.b16 %v1009, %v1007
        %v1084 = vpack.c.b16 %v1010, %v1008
        %v1085 = vpack.c.b16 %v1013, %v1011
        %v1086 = vpack.c.b16 %v1014, %v1012
        %v1087 = vpack.c.b16 %v1017, %v1015
        %v1088 = vpack.c.b16 %v1018, %v1016
        %v1089 = vpack.c.b16 %v1021, %v1019
        %v1090 = vpack.c.b16 %v1022, %v1020
        %v1091 = vpack.c.b16 %v1025, %v1023
        %v1092 = vpack.c.b16 %v1026, %v1024
        %v1093 = vpack.c.b16 %v1029, %v1027
        %v1094 = vpack.c.b16 %v1030, %v1028
        %v1095 = vpack.c.b16 %v1033, %v1031
        %v1096 = vpack.c.b16 %v1034, %v1032
        %v1097 = vpack.c.b16 %v1037, %v1035
        %v1098 = vpack.c.b16 %v1038, %v1036
        %v1099 = vpack.c.b16 %v1041, %v1039
        %v1100 = vpack.c.b16 %v1042, %v1040
        %v1101 = vpack.c.b16 %v1045, %v1043
        %v1102 = vpack.c.b16 %v1046, %v1044
        %v1103 = vpack.c.b16 %v1049, %v1047
        %v1104 = vpack.c.b16 %v1050, %v1048
        %v1105 = vpack.c.b16 %v1053, %v1051
        %v1106 = vpack.c.b16 %v1054, %v1052
        %v1107 = vpack.c.b16 %v1057, %v1055
        %v1108 = vpack.c.b16 %v1058, %v1056
        %v1109 = vpack.c.b16 %v1061, %v1059
        %v1110 = vpack.c.b16 %v1062, %v1060
        %v1111 = vpack.c.b16 %v1065, %v1063
        %v1112 = vpack.c.b16 %v1066, %v1064
        %v1113 = vpack.c.b16 %v1069, %v1067
        %v1114 = vpack.c.b16 %v1070, %v1068
        %v1115 = vpack.c.b16 %v1073, %v1071
        %v1116 = vpack.c.b16 %v1074, %v1072
        %v1117 = vpack.c.b16 %v1077, %v1075
        %v1118 = vpack.c.b16 %v1078, %v1076
        %v1119 = vpack.c.b16 %v1081, %v1079
        %v1120 = vpack.c.b16 %v1082, %v1080
        %v1158 = vsel %vm665, %v1119, 0
        %v1161 = vsel %vm665, %v1120, 0
        %1163 = vmatprep.subr.bf16.mxu0 %v1084
        %1164 = vmatpush1.bf16.msra.mxu0 %v1083
        %1165 = vmatprep.subr.bf16.mxu0 %v1086
        %1166 = vmatpush1.bf16.msra.mxu0 %v1085
        %1167 = vmatprep.subr.bf16.mxu0 %v1088
        %1168 = vmatpush1.bf16.msra.mxu0 %v1087
        %1169 = vmatprep.subr.bf16.mxu0 %v1090
        %1170 = vmatpush1.bf16.msra.mxu0 %v1089
        %1171 = vmatprep.subr.bf16.mxu0 %v1092
        %1172 = vmatpush1.bf16.msra.mxu0 %v1091
        %1173 = vmatprep.subr.bf16.mxu0 %v1094
        %1174 = vmatpush1.bf16.msra.mxu0 %v1093
        %1175 = vmatprep.subr.bf16.mxu0 %v1096
        %1176 = vmatpush1.bf16.msra.mxu0 %v1095
        %1177 = vmatprep.subr.bf16.mxu0 %v1098
        %1178 = vmatpush1.bf16.msra.mxu0 %v1097
        %1179 = vmatprep.subr.bf16.mxu0 %v1100
        %1180 = vmatpush1.bf16.msra.mxu0 %v1099
        %1181 = vmatprep.subr.bf16.mxu0 %v1102
        %1182 = vmatpush1.bf16.msra.mxu0 %v1101
        %1183 = vmatprep.subr.bf16.mxu0 %v1104
        %1184 = vmatpush1.bf16.msra.mxu0 %v1103
        %1185 = vmatprep.subr.bf16.mxu0 %v1106
        %1186 = vmatpush1.bf16.msra.mxu0 %v1105
        %1187 = vmatprep.subr.bf16.mxu0 %v1108
        %1188 = vmatpush1.bf16.msra.mxu0 %v1107
        %1189 = vmatprep.subr.bf16.mxu0 %v1110
        %1190 = vmatpush1.bf16.msra.mxu0 %v1109
        %1191 = vmatprep.subr.bf16.mxu0 %v1112
        %1192 = vmatpush1.bf16.msra.mxu0 %v1111
        %1193 = vmatprep.subr.bf16.mxu0 %v1114
        %1194 = vmatpush1.bf16.msra.mxu0 %v1113
        %1195 = vmatprep.mubr.bf16.mxu0 %v380
        %1196 = vmatmul.mubr.bf16.gmra.mrb[0].mxu0 %v379
        %v1197 = vpop.f32.mrb[0].mxu0
        %v1198 = vadd.f32 0.0, %v1197
        %v1199 = vpop.f32.mrb[0].mxu0
        %v1200 = vadd.f32 0.0, %v1199
        %v1201 = vpop.f32.mrb[0].mxu0
        %v1202 = vadd.f32 0.0, %v1201
        %v1203 = vpop.f32.mrb[0].mxu0
        %v1204 = vadd.f32 0.0, %v1203
        %1205 = vmatprep.mubr.bf16.mxu0 %v383
        %1206 = vmatmul.mubr.bf16.gmra.mrb[0].mxu0 %v382
        %v1207 = vpop.f32.mrb[0].mxu0
        %v1208 = vadd.f32 0.0, %v1207
        %v1209 = vpop.f32.mrb[0].mxu0
        %v1210 = vadd.f32 0.0, %v1209
        %v1211 = vpop.f32.mrb[0].mxu0
        %v1212 = vadd.f32 0.0, %v1211
        %v1213 = vpop.f32.mrb[0].mxu0
        %v1214 = vadd.f32 0.0, %v1213
        %1215 = vmatprep.mubr.bf16.mxu0 %v386
        %1216 = vmatmul.mubr.bf16.gmra.mrb[0].mxu0 %v385
        %v1217 = vpop.f32.mrb[0].mxu0
        %v1218 = vadd.f32 0.0, %v1217
        %v1219 = vpop.f32.mrb[0].mxu0
        %v1220 = vadd.f32 0.0, %v1219
        %v1221 = vpop.f32.mrb[0].mxu0
        %v1222 = vadd.f32 0.0, %v1221
        %v1223 = vpop.f32.mrb[0].mxu0
        %v1224 = vadd.f32 0.0, %v1223
        %1225 = vmatprep.mubr.bf16.mxu0 %v389
        %1226 = vmatmul.mubr.bf16.gmra.mrb[0].mxu0 %v388
        %v1227 = vpop.f32.mrb[0].mxu0
        %v1228 = vadd.f32 0.0, %v1227
        %v1229 = vpop.f32.mrb[0].mxu0
        %v1230 = vadd.f32 0.0, %v1229
        %v1231 = vpop.f32.mrb[0].mxu0
        %v1232 = vadd.f32 0.0, %v1231
        %v1233 = vpop.f32.mrb[0].mxu0
        %v1234 = vadd.f32 0.0, %v1233
        %1235 = vmatprep.mubr.bf16.mxu0 %v392
        %1236 = vmatmul.mubr.bf16.gmra.mrb[0].mxu0 %v391
        %v1237 = vpop.f32.mrb[0].mxu0
        %v1238 = vadd.f32 0.0, %v1237
        %v1239 = vpop.f32.mrb[0].mxu0
        %v1240 = vadd.f32 0.0, %v1239
        %v1241 = vpop.f32.mrb[0].mxu0
        %v1242 = vadd.f32 0.0, %v1241
        %v1243 = vpop.f32.mrb[0].mxu0
        %v1244 = vadd.f32 0.0, %v1243
        %1245 = vmatprep.mubr.bf16.mxu0 %v395
        %1246 = vmatmul.mubr.bf16.gmra.mrb[0].mxu0 %v394
        %v1247 = vpop.f32.mrb[0].mxu0
        %v1248 = vadd.f32 0.0, %v1247
        %v1249 = vpop.f32.mrb[0].mxu0
        %v1250 = vadd.f32 0.0, %v1249
        %v1251 = vpop.f32.mrb[0].mxu0
        %v1252 = vadd.f32 0.0, %v1251
        %v1253 = vpop.f32.mrb[0].mxu0
        %v1254 = vadd.f32 0.0, %v1253
        %1255 = vmatprep.mubr.bf16.mxu0 %v398
        %1256 = vmatmul.mubr.bf16.gmra.mrb[0].mxu0 %v397
        %v1257 = vpop.f32.mrb[0].mxu0
        %v1258 = vadd.f32 0.0, %v1257
        %v1259 = vpop.f32.mrb[0].mxu0
        %v1260 = vadd.f32 0.0, %v1259
        %v1261 = vpop.f32.mrb[0].mxu0
        %v1262 = vadd.f32 0.0, %v1261
        %v1263 = vpop.f32.mrb[0].mxu0
        %v1264 = vadd.f32 0.0, %v1263
        %1265 = vmatprep.mubr.bf16.mxu0 %v401
        %1266 = vmatmul.mubr.bf16.gmra.mrb[0].mxu0 %v400
        %v1267 = vpop.f32.mrb[0].mxu0
        %v1268 = vadd.f32 0.0, %v1267
        %v1269 = vpop.f32.mrb[0].mxu0
        %v1270 = vadd.f32 0.0, %v1269
        %v1271 = vpop.f32.mrb[0].mxu0
        %v1272 = vadd.f32 0.0, %v1271
        %v1273 = vpop.f32.mrb[0].mxu0
        %v1274 = vadd.f32 0.0, %v1273
        %1275 = vdwg.mxu0
        %1276 = vmatprep.subr.bf16.mxu0 %v1116
        %1277 = vmatpush1.bf16.msra.mxu0 %v1115
        %1278 = vmatprep.subr.bf16.mxu0 %v1118
        %1279 = vmatpush1.bf16.msra.mxu0 %v1117
        %1280 = vmatprep.subr.bf16.mxu0 %v1161
        %1281 = vmatpush1.bf16.msra.mxu0 %v1158
        %1282 = vmatprep.subr.bf16.mxu0 0
        %1283 = vmatpush1.bf16.msra.mxu0 0
        %1284 = vmatprep.subr.bf16.mxu0 0
        %1285 = vmatpush1.bf16.msra.mxu0 0
        %1286 = vmatprep.subr.bf16.mxu0 0
        %1287 = vmatpush1.bf16.msra.mxu0 0
        %1288 = vmatprep.subr.bf16.mxu0 0
        %1289 = vmatpush1.bf16.msra.mxu0 0
        %1290 = vmatprep.subr.bf16.mxu0 0
        %1291 = vmatpush1.bf16.msra.mxu0 0
        %1292 = vmatprep.subr.bf16.mxu0 0
        %1293 = vmatpush1.bf16.msra.mxu0 0
        %1294 = vmatprep.subr.bf16.mxu0 0
        %1295 = vmatpush1.bf16.msra.mxu0 0
        %1296 = vmatprep.subr.bf16.mxu0 0
        %1297 = vmatpush1.bf16.msra.mxu0 0
        %1298 = vmatprep.subr.bf16.mxu0 0
        %1299 = vmatpush1.bf16.msra.mxu0 0
        %1300 = vmatprep.subr.bf16.mxu0 0
        %1301 = vmatpush1.bf16.msra.mxu0 0
        %1302 = vmatprep.subr.bf16.mxu0 0
        %1303 = vmatpush1.bf16.msra.mxu0 0
        %1304 = vmatprep.subr.bf16.mxu0 0
        %1305 = vmatpush1.bf16.msra.mxu0 0
        %1306 = vmatprep.subr.bf16.mxu0 0
        %1307 = vmatpush1.bf16.msra.mxu0 0
        %1308 = vmatprep.mubr.bf16.mxu0 0
        %1309 = vmatmul.mubr.bf16.gmra.mrb[0].mxu0 %v642
        %v1310 = vpop.f32.mrb[0].mxu0
        %v1311 = vadd.f32 %v1198, %v1310
        %v1312 = vpop.f32.mrb[0].mxu0
        %v1313 = vadd.f32 %v1200, %v1312
        %v1314 = vpop.f32.mrb[0].mxu0
        %v1315 = vadd.f32 %v1202, %v1314
        %v1316 = vpop.f32.mrb[0].mxu0
        %v1317 = vadd.f32 %v1204, %v1316
        %1318 = vmatprep.mubr.bf16.mxu0 0
        %1319 = vmatmul.mubr.bf16.gmra.mrb[0].mxu0 %v645
        %v1320 = vpop.f32.mrb[0].mxu0
        %v1321 = vadd.f32 %v1208, %v1320
        %v1322 = vpop.f32.mrb[0].mxu0
        %v1323 = vadd.f32 %v1210, %v1322
        %v1324 = vpop.f32.mrb[0].mxu0
        %v1325 = vadd.f32 %v1212, %v1324
        %v1326 = vpop.f32.mrb[0].mxu0
        %v1327 = vadd.f32 %v1214, %v1326
        %1328 = vmatprep.mubr.bf16.mxu0 0
        %1329 = vmatmul.mubr.bf16.gmra.mrb[0].mxu0 %v648
        %v1330 = vpop.f32.mrb[0].mxu0
        %v1331 = vadd.f32 %v1218, %v1330
        %v1332 = vpop.f32.mrb[0].mxu0
        %v1333 = vadd.f32 %v1220, %v1332
        %v1334 = vpop.f32.mrb[0].mxu0
        %v1335 = vadd.f32 %v1222, %v1334
        %v1336 = vpop.f32.mrb[0].mxu0
        %v1337 = vadd.f32 %v1224, %v1336
        %1338 = vmatprep.mubr.bf16.mxu0 0
        %1339 = vmatmul.mubr.bf16.gmra.mrb[0].mxu0 %v651
        %v1340 = vpop.f32.mrb[0].mxu0
        %v1341 = vadd.f32 %v1228, %v1340
        %v1342 = vpop.f32.mrb[0].mxu0
        %v1343 = vadd.f32 %v1230, %v1342
        %v1344 = vpop.f32.mrb[0].mxu0
        %v1345 = vadd.f32 %v1232, %v1344
        %v1346 = vpop.f32.mrb[0].mxu0
        %v1347 = vadd.f32 %v1234, %v1346
        %1348 = vmatprep.mubr.bf16.mxu0 0
        %1349 = vmatmul.mubr.bf16.gmra.mrb[0].mxu0 %v654
        %v1350 = vpop.f32.mrb[0].mxu0
        %v1351 = vadd.f32 %v1238, %v1350
        %v1352 = vpop.f32.mrb[0].mxu0
        %v1353 = vadd.f32 %v1240, %v1352
        %v1354 = vpop.f32.mrb[0].mxu0
        %v1355 = vadd.f32 %v1242, %v1354
        %v1356 = vpop.f32.mrb[0].mxu0
        %v1357 = vadd.f32 %v1244, %v1356
        %1358 = vmatprep.mubr.bf16.mxu0 0
        %1359 = vmatmul.mubr.bf16.gmra.mrb[0].mxu0 %v657
        %v1360 = vpop.f32.mrb[0].mxu0
        %v1361 = vadd.f32 %v1248, %v1360
        %v1362 = vpop.f32.mrb[0].mxu0
        %v1363 = vadd.f32 %v1250, %v1362
        %v1364 = vpop.f32.mrb[0].mxu0
        %v1365 = vadd.f32 %v1252, %v1364
        %v1366 = vpop.f32.mrb[0].mxu0
        %v1367 = vadd.f32 %v1254, %v1366
        %1368 = vmatprep.mubr.bf16.mxu0 0
        %1369 = vmatmul.mubr.bf16.gmra.mrb[0].mxu0 %v660
        %v1370 = vpop.f32.mrb[0].mxu0
        %v1371 = vadd.f32 %v1258, %v1370
        %v1372 = vpop.f32.mrb[0].mxu0
        %v1373 = vadd.f32 %v1260, %v1372
        %v1374 = vpop.f32.mrb[0].mxu0
        %v1375 = vadd.f32 %v1262, %v1374
        %v1376 = vpop.f32.mrb[0].mxu0
        %v1377 = vadd.f32 %v1264, %v1376
        %1378 = vmatprep.mubr.bf16.mxu0 0
        %1379 = vmatmul.mubr.bf16.gmra.mrb[0].mxu0 %v663
        %v1380 = vpop.f32.mrb[0].mxu0
        %v1381 = vadd.f32 %v1268, %v1380
        %v1382 = vpop.f32.mrb[0].mxu0
        %v1383 = vadd.f32 %v1270, %v1382
        %v1384 = vpop.f32.mrb[0].mxu0
        %v1385 = vadd.f32 %v1272, %v1384
        %v1386 = vpop.f32.mrb[0].mxu0
        %v1387 = vadd.f32 %v1274, %v1386
        %1388 = vdwg.mxu0
        %vm1421 = vcmask 1046528
        %v1422 = vrot.slane %v1311, 1
        %v1423 = vrot.slane %v1315, 1
        %v1424 = vsel %vm1421, %v1422, %v1423
        %v1425 = vrot.slane %v1313, 1
        %v1426 = vrot.slane %v1317, 1
        %v1427 = vsel %vm1421, %v1425, %v1426
        %v1428 = vrot.slane %v1321, 1
        %v1429 = vrot.slane %v1325, 1
        %v1430 = vsel %vm1421, %v1428, %v1429
        %v1431 = vrot.slane %v1323, 1
        %v1432 = vrot.slane %v1327, 1
        %v1433 = vsel %vm1421, %v1431, %v1432
        %v1434 = vrot.slane %v1331, 1
        %v1435 = vrot.slane %v1335, 1
        %v1436 = vsel %vm1421, %v1434, %v1435
        %v1437 = vrot.slane %v1333, 1
        %v1438 = vrot.slane %v1337, 1
        %v1439 = vsel %vm1421, %v1437, %v1438
        %v1440 = vrot.slane %v1341, 1
        %v1441 = vrot.slane %v1345, 1
        %v1442 = vsel %vm1421, %v1440, %v1441
        %v1443 = vrot.slane %v1343, 1
        %v1444 = vrot.slane %v1347, 1
        %v1445 = vsel %vm1421, %v1443, %v1444
        %v1446 = vrot.slane %v1351, 1
        %v1447 = vrot.slane %v1355, 1
        %v1448 = vsel %vm1421, %v1446, %v1447
        %v1449 = vrot.slane %v1353, 1
        %v1450 = vrot.slane %v1357, 1
        %v1451 = vsel %vm1421, %v1449, %v1450
        %v1452 = vrot.slane %v1361, 1
        %v1453 = vrot.slane %v1365, 1
        %v1454 = vsel %vm1421, %v1452, %v1453
        %v1455 = vrot.slane %v1363, 1
        %v1456 = vrot.slane %v1367, 1
        %v1457 = vsel %vm1421, %v1455, %v1456
        %v1458 = vrot.slane %v1371, 1
        %v1459 = vrot.slane %v1375, 1
        %v1460 = vsel %vm1421, %v1458, %v1459
        %v1461 = vrot.slane %v1373, 1
        %v1462 = vrot.slane %v1377, 1
        %v1463 = vsel %vm1421, %v1461, %v1462
        %v1464 = vrot.slane %v1381, 1
        %v1465 = vrot.slane %v1385, 1
        %v1466 = vsel %vm1421, %v1464, %v1465
        %v1467 = vrot.slane %v1383, 1
        %v1468 = vrot.slane %v1387, 1
        %v1469 = vsel %vm1421, %v1467, %v1468
        %v1502 = vadd.f32 %v898, %v1424
        %v1503 = vadd.f32 %v899, %v1427
        %v1504 = vadd.f32 %v900, %v1423
        %v1505 = vadd.f32 %v901, %v1426
        %v1506 = vadd.f32 %v902, %v1430
        %v1507 = vadd.f32 %v903, %v1433
        %v1508 = vadd.f32 %v904, %v1429
        %v1509 = vadd.f32 %v905, %v1432
        %v1510 = vadd.f32 %v906, %v1436
        %v1511 = vadd.f32 %v907, %v1439
        %v1512 = vadd.f32 %v908, %v1435
        %v1513 = vadd.f32 %v909, %v1438
        %v1514 = vadd.f32 %v910, %v1442
        %v1515 = vadd.f32 %v911, %v1445
        %v1516 = vadd.f32 %v912, %v1441
        %v1517 = vadd.f32 %v913, %v1444
        %v1518 = vadd.f32 %v914, %v1448
        %v1519 = vadd.f32 %v915, %v1451
        %v1520 = vadd.f32 %v916, %v1447
        %v1521 = vadd.f32 %v917, %v1450
        %v1522 = vadd.f32 %v918, %v1454
        %v1523 = vadd.f32 %v919, %v1457
        %v1524 = vadd.f32 %v920, %v1453
        %v1525 = vadd.f32 %v921, %v1456
        %v1526 = vadd.f32 %v922, %v1460
        %v1527 = vadd.f32 %v923, %v1463
        %v1528 = vadd.f32 %v924, %v1459
        %v1529 = vadd.f32 %v925, %v1462
        %v1530 = vadd.f32 %v926, %v1466
        %v1531 = vadd.f32 %v927, %v1469
        %v1532 = vadd.f32 %v928, %v1465
        %v1533 = vadd.f32 %v929, %v1468
        %s1534 = scalar_lea.vmem [#allocation4], 608
        %v1535 = vld [vmem:[%s1534] sm:$0xff]
        %v1536 = vld [vmem:[%s1534 + $0x8] sm:$0xff]
        %v1537 = vld [vmem:[%s1534 + $0x10] sm:$0xff]
        %v1538 = vld [vmem:[%s1534 + $0x18] sm:$0xff]
        %v1539 = vld [vmem:[%s1534 + $0x20] sm:$0xff]
        %v1540 = vld [vmem:[%s1534 + $0x28] sm:$0xff]
        %v1541 = vld [vmem:[%s1534 + $0x30] sm:$0xff]
        %v1542 = vld [vmem:[%s1534 + $0x38] sm:$0xff]
        %v1543 = vld [vmem:[%s1534 + $0x40] sm:$0xff]
        %v1544 = vld [vmem:[%s1534 + $0x48] sm:$0xff]
        %v1545 = vld [vmem:[%s1534 + $0x50] sm:$0xff]
        %v1546 = vld [vmem:[%s1534 + $0x58] sm:$0xff]
        %v1547 = vld [vmem:[%s1534 + $0x60] sm:$0xff]
        %v1548 = vld [vmem:[%s1534 + $0x68] sm:$0xff]
        %v1549 = vld [vmem:[%s1534 + $0x70] sm:$0xff]
        %v1550 = vld [vmem:[%s1534 + $0x78] sm:$0xff]
        %v1551 = vld [vmem:[%s1534 + $0x80] sm:$0xff]
        %v1552 = vld [vmem:[%s1534 + $0x88] sm:$0xff]
        %v1553 = vld [vmem:[%s1534 + $0x90] sm:$0xff]
        %v1554 = vld [vmem:[%s1534 + $0x98] sm:$0xff]
        %v1555 = vld [vmem:[%s1534 + $0xa0] sm:$0xff]
        %v1556 = vld [vmem:[%s1534 + $0xa8] sm:$0xff]
        %v1557 = vld [vmem:[%s1534 + $0xb0] sm:$0xff]
        %v1558 = vld [vmem:[%s1534 + $0xb8] sm:$0xff]
        %v1559 = vld [vmem:[%s1534 + $0xc0] sm:$0xff]
        %v1560 = vld [vmem:[%s1534 + $0xc8] sm:$0xff]
        %v1561 = vld [vmem:[%s1534 + $0xd0] sm:$0xff]
        %v1562 = vld [vmem:[%s1534 + $0xd8] sm:$0xff]
        %v1563 = vld [vmem:[%s1534 + $0xe0] sm:$0xff]
        %v1564 = vld [vmem:[%s1534 + $0xe8] sm:$0xff]
        %v1565 = vld [vmem:[%s1534 + $0xf0] sm:$0xff]
        %v1566 = vld [vmem:[%s1534 + $0xf8] sm:$0xff]
        %v1567 = vld [vmem:[%s1534 + $0x100] sm:$0xff]
        %v1568 = vld [vmem:[%s1534 + $0x108] sm:$0xff]
        %v1569 = vld [vmem:[%s1534 + $0x110] sm:$0xff]
        %v1570 = vld [vmem:[%s1534 + $0x118] sm:$0xff]
        %v1571 = vld [vmem:[%s1534 + $0x120] sm:$0xff]
        %v1572 = vld [vmem:[%s1534 + $0x128] sm:$0x33]
        %v1611 = vunpack.c.l.b16 %v1535
        %v1612 = vunpack.c.h.b16 %v1535
        %v1613 = vunpack.c.l.b16 %v1536
        %v1614 = vunpack.c.h.b16 %v1536
        %v1615 = vunpack.c.l.b16 %v1537
        %v1616 = vunpack.c.h.b16 %v1537
        %v1617 = vunpack.c.l.b16 %v1538
        %v1618 = vunpack.c.h.b16 %v1538
        %v1619 = vunpack.c.l.b16 %v1539
        %v1620 = vunpack.c.h.b16 %v1539
        %v1621 = vunpack.c.l.b16 %v1540
        %v1622 = vunpack.c.h.b16 %v1540
        %v1623 = vunpack.c.l.b16 %v1541
        %v1624 = vunpack.c.h.b16 %v1541
        %v1625 = vunpack.c.l.b16 %v1542
        %v1626 = vunpack.c.h.b16 %v1542
        %v1627 = vunpack.c.l.b16 %v1543
        %v1628 = vunpack.c.h.b16 %v1543
        %v1629 = vunpack.c.l.b16 %v1544
        %v1630 = vunpack.c.h.b16 %v1544
        %v1631 = vunpack.c.l.b16 %v1545
        %v1632 = vunpack.c.h.b16 %v1545
        %v1633 = vunpack.c.l.b16 %v1546
        %v1634 = vunpack.c.h.b16 %v1546
        %v1635 = vunpack.c.l.b16 %v1547
        %v1636 = vunpack.c.h.b16 %v1547
        %v1637 = vunpack.c.l.b16 %v1548
        %v1638 = vunpack.c.h.b16 %v1548
        %v1639 = vunpack.c.l.b16 %v1549
        %v1640 = vunpack.c.h.b16 %v1549
        %v1641 = vunpack.c.l.b16 %v1550
        %v1642 = vunpack.c.h.b16 %v1550
        %v1643 = vunpack.c.l.b16 %v1551
        %v1644 = vunpack.c.h.b16 %v1551
        %v1645 = vunpack.c.l.b16 %v1552
        %v1646 = vunpack.c.h.b16 %v1552
        %v1647 = vunpack.c.l.b16 %v1553
        %v1648 = vunpack.c.h.b16 %v1553
        %v1649 = vunpack.c.l.b16 %v1554
        %v1650 = vunpack.c.h.b16 %v1554
        %v1651 = vunpack.c.l.b16 %v1555
        %v1652 = vunpack.c.h.b16 %v1555
        %v1653 = vunpack.c.l.b16 %v1556
        %v1654 = vunpack.c.h.b16 %v1556
        %v1655 = vunpack.c.l.b16 %v1557
        %v1656 = vunpack.c.h.b16 %v1557
        %v1657 = vunpack.c.l.b16 %v1558
        %v1658 = vunpack.c.h.b16 %v1558
        %v1659 = vunpack.c.l.b16 %v1559
        %v1660 = vunpack.c.h.b16 %v1559
        %v1661 = vunpack.c.l.b16 %v1560
        %v1662 = vunpack.c.h.b16 %v1560
        %v1663 = vunpack.c.l.b16 %v1561
        %v1664 = vunpack.c.h.b16 %v1561
        %v1665 = vunpack.c.l.b16 %v1562
        %v1666 = vunpack.c.h.b16 %v1562
        %v1667 = vunpack.c.l.b16 %v1563
        %v1668 = vunpack.c.h.b16 %v1563
        %v1669 = vunpack.c.l.b16 %v1564
        %v1670 = vunpack.c.h.b16 %v1564
        %v1671 = vunpack.c.l.b16 %v1565
        %v1672 = vunpack.c.h.b16 %v1565
        %v1673 = vunpack.c.l.b16 %v1566
        %v1674 = vunpack.c.h.b16 %v1566
        %v1675 = vunpack.c.l.b16 %v1567
        %v1676 = vunpack.c.h.b16 %v1567
        %v1677 = vunpack.c.l.b16 %v1568
        %v1678 = vunpack.c.h.b16 %v1568
        %v1679 = vunpack.c.l.b16 %v1569
        %v1680 = vunpack.c.h.b16 %v1569
        %v1681 = vunpack.c.l.b16 %v1570
        %v1682 = vunpack.c.h.b16 %v1570
        %v1683 = vunpack.c.l.b16 %v1571
        %v1684 = vunpack.c.h.b16 %v1571
        %v1685 = vunpack.c.l.b16 %v1572
        %v1686 = vunpack.c.h.b16 %v1572
        %v1687 = vpack.c.b16 %v1613, %v1611
        %v1688 = vpack.c.b16 %v1614, %v1612
        %v1689 = vpack.c.b16 %v1617, %v1615
        %v1690 = vpack.c.b16 %v1618, %v1616
        %v1691 = vpack.c.b16 %v1621, %v1619
        %v1692 = vpack.c.b16 %v1622, %v1620
        %v1693 = vpack.c.b16 %v1625, %v1623
        %v1694 = vpack.c.b16 %v1626, %v1624
        %v1695 = vpack.c.b16 %v1629, %v1627
        %v1696 = vpack.c.b16 %v1630, %v1628
        %v1697 = vpack.c.b16 %v1633, %v1631
        %v1698 = vpack.c.b16 %v1634, %v1632
        %v1699 = vpack.c.b16 %v1637, %v1635
        %v1700 = vpack.c.b16 %v1638, %v1636
        %v1701 = vpack.c.b16 %v1641, %v1639
        %v1702 = vpack.c.b16 %v1642, %v1640
        %v1703 = vpack.c.b16 %v1645, %v1643
        %v1704 = vpack.c.b16 %v1646, %v1644
        %v1705 = vpack.c.b16 %v1649, %v1647
        %v1706 = vpack.c.b16 %v1650, %v1648
        %v1707 = vpack.c.b16 %v1653, %v1651
        %v1708 = vpack.c.b16 %v1654, %v1652
        %v1709 = vpack.c.b16 %v1657, %v1655
        %v1710 = vpack.c.b16 %v1658, %v1656
        %v1711 = vpack.c.b16 %v1661, %v1659
        %v1712 = vpack.c.b16 %v1662, %v1660
        %v1713 = vpack.c.b16 %v1665, %v1663
        %v1714 = vpack.c.b16 %v1666, %v1664
        %v1715 = vpack.c.b16 %v1669, %v1667
        %v1716 = vpack.c.b16 %v1670, %v1668
        %v1717 = vpack.c.b16 %v1673, %v1671
        %v1718 = vpack.c.b16 %v1674, %v1672
        %v1719 = vpack.c.b16 %v1677, %v1675
        %v1720 = vpack.c.b16 %v1678, %v1676
        %v1721 = vpack.c.b16 %v1681, %v1679
        %v1722 = vpack.c.b16 %v1682, %v1680
        %v1723 = vpack.c.b16 %v1685, %v1683
        %v1724 = vpack.c.b16 %v1686, %v1684
        %v1762 = vsel %vm665, %v1723, 0
        %v1765 = vsel %vm665, %v1724, 0
        %1767 = vmatprep.subr.bf16.mxu0 %v1688
        %1768 = vmatpush1.bf16.msra.mxu0 %v1687
        %1769 = vmatprep.subr.bf16.mxu0 %v1690
        %1770 = vmatpush1.bf16.msra.mxu0 %v1689
        %1771 = vmatprep.subr.bf16.mxu0 %v1692
        %1772 = vmatpush1.bf16.msra.mxu0 %v1691
        %1773 = vmatprep.subr.bf16.mxu0 %v1694
        %1774 = vmatpush1.bf16.msra.mxu0 %v1693
        %1775 = vmatprep.subr.bf16.mxu0 %v1696
        %1776 = vmatpush1.bf16.msra.mxu0 %v1695
        %1777 = vmatprep.subr.bf16.mxu0 %v1698
        %1778 = vmatpush1.bf16.msra.mxu0 %v1697
        %1779 = vmatprep.subr.bf16.mxu0 %v1700
        %1780 = vmatpush1.bf16.msra.mxu0 %v1699
        %1781 = vmatprep.subr.bf16.mxu0 %v1702
        %1782 = vmatpush1.bf16.msra.mxu0 %v1701
        %1783 = vmatprep.subr.bf16.mxu0 %v1704
        %1784 = vmatpush1.bf16.msra.mxu0 %v1703
        %1785 = vmatprep.subr.bf16.mxu0 %v1706
        %1786 = vmatpush1.bf16.msra.mxu0 %v1705
        %1787 = vmatprep.subr.bf16.mxu0 %v1708
        %1788 = vmatpush1.bf16.msra.mxu0 %v1707
        %1789 = vmatprep.subr.bf16.mxu0 %v1710
        %1790 = vmatpush1.bf16.msra.mxu0 %v1709
        %1791 = vmatprep.subr.bf16.mxu0 %v1712
        %1792 = vmatpush1.bf16.msra.mxu0 %v1711
        %1793 = vmatprep.subr.bf16.mxu0 %v1714
        %1794 = vmatpush1.bf16.msra.mxu0 %v1713
        %1795 = vmatprep.subr.bf16.mxu0 %v1716
        %1796 = vmatpush1.bf16.msra.mxu0 %v1715
        %1797 = vmatprep.subr.bf16.mxu0 %v1718
        %1798 = vmatpush1.bf16.msra.mxu0 %v1717
        %1799 = vmatprep.mubr.bf16.mxu0 %v380
        %1800 = vmatmul.mubr.bf16.gmra.mrb[0].mxu0 %v379
        %v1801 = vpop.f32.mrb[0].mxu0
        %v1802 = vadd.f32 0.0, %v1801
        %v1803 = vpop.f32.mrb[0].mxu0
        %v1804 = vadd.f32 0.0, %v1803
        %v1805 = vpop.f32.mrb[0].mxu0
        %v1806 = vadd.f32 0.0, %v1805
        %v1807 = vpop.f32.mrb[0].mxu0
        %v1808 = vadd.f32 0.0, %v1807
        %1809 = vmatprep.mubr.bf16.mxu0 %v383
        %1810 = vmatmul.mubr.bf16.gmra.mrb[0].mxu0 %v382
        %v1811 = vpop.f32.mrb[0].mxu0
        %v1812 = vadd.f32 0.0, %v1811
        %v1813 = vpop.f32.mrb[0].mxu0
        %v1814 = vadd.f32 0.0, %v1813
        %v1815 = vpop.f32.mrb[0].mxu0
        %v1816 = vadd.f32 0.0, %v1815
        %v1817 = vpop.f32.mrb[0].mxu0
        %v1818 = vadd.f32 0.0, %v1817
        %1819 = vmatprep.mubr.bf16.mxu0 %v386
        %1820 = vmatmul.mubr.bf16.gmra.mrb[0].mxu0 %v385
        %v1821 = vpop.f32.mrb[0].mxu0
        %v1822 = vadd.f32 0.0, %v1821
        %v1823 = vpop.f32.mrb[0].mxu0
        %v1824 = vadd.f32 0.0, %v1823
        %v1825 = vpop.f32.mrb[0].mxu0
        %v1826 = vadd.f32 0.0, %v1825
        %v1827 = vpop.f32.mrb[0].mxu0
        %v1828 = vadd.f32 0.0, %v1827
        %1829 = vmatprep.mubr.bf16.mxu0 %v389
        %1830 = vmatmul.mubr.bf16.gmra.mrb[0].mxu0 %v388
        %v1831 = vpop.f32.mrb[0].mxu0
        %v1832 = vadd.f32 0.0, %v1831
        %v1833 = vpop.f32.mrb[0].mxu0
        %v1834 = vadd.f32 0.0, %v1833
        %v1835 = vpop.f32.mrb[0].mxu0
        %v1836 = vadd.f32 0.0, %v1835
        %v1837 = vpop.f32.mrb[0].mxu0
        %v1838 = vadd.f32 0.0, %v1837
        %1839 = vmatprep.mubr.bf16.mxu0 %v392
        %1840 = vmatmul.mubr.bf16.gmra.mrb[0].mxu0 %v391
        %v1841 = vpop.f32.mrb[0].mxu0
        %v1842 = vadd.f32 0.0, %v1841
        %v1843 = vpop.f32.mrb[0].mxu0
        %v1844 = vadd.f32 0.0, %v1843
        %v1845 = vpop.f32.mrb[0].mxu0
        %v1846 = vadd.f32 0.0, %v1845
        %v1847 = vpop.f32.mrb[0].mxu0
        %v1848 = vadd.f32 0.0, %v1847
        %1849 = vmatprep.mubr.bf16.mxu0 %v395
        %1850 = vmatmul.mubr.bf16.gmra.mrb[0].mxu0 %v394
        %v1851 = vpop.f32.mrb[0].mxu0
        %v1852 = vadd.f32 0.0, %v1851
        %v1853 = vpop.f32.mrb[0].mxu0
        %v1854 = vadd.f32 0.0, %v1853
        %v1855 = vpop.f32.mrb[0].mxu0
        %v1856 = vadd.f32 0.0, %v1855
        %v1857 = vpop.f32.mrb[0].mxu0
        %v1858 = vadd.f32 0.0, %v1857
        %1859 = vmatprep.mubr.bf16.mxu0 %v398
        %1860 = vmatmul.mubr.bf16.gmra.mrb[0].mxu0 %v397
        %v1861 = vpop.f32.mrb[0].mxu0
        %v1862 = vadd.f32 0.0, %v1861
        %v1863 = vpop.f32.mrb[0].mxu0
        %v1864 = vadd.f32 0.0, %v1863
        %v1865 = vpop.f32.mrb[0].mxu0
        %v1866 = vadd.f32 0.0, %v1865
        %v1867 = vpop.f32.mrb[0].mxu0
        %v1868 = vadd.f32 0.0, %v1867
        %1869 = vmatprep.mubr.bf16.mxu0 %v401
        %1870 = vmatmul.mubr.bf16.gmra.mrb[0].mxu0 %v400
        %v1871 = vpop.f32.mrb[0].mxu0
        %v1872 = vadd.f32 0.0, %v1871
        %v1873 = vpop.f32.mrb[0].mxu0
        %v1874 = vadd.f32 0.0, %v1873
        %v1875 = vpop.f32.mrb[0].mxu0
        %v1876 = vadd.f32 0.0, %v1875
        %v1877 = vpop.f32.mrb[0].mxu0
        %v1878 = vadd.f32 0.0, %v1877
        %1879 = vdwg.mxu0
        %1880 = vmatprep.subr.bf16.mxu0 %v1720
        %1881 = vmatpush1.bf16.msra.mxu0 %v1719
        %1882 = vmatprep.subr.bf16.mxu0 %v1722
        %1883 = vmatpush1.bf16.msra.mxu0 %v1721
        %1884 = vmatprep.subr.bf16.mxu0 %v1765
        %1885 = vmatpush1.bf16.msra.mxu0 %v1762
        %1886 = vmatprep.subr.bf16.mxu0 0
        %1887 = vmatpush1.bf16.msra.mxu0 0
        %1888 = vmatprep.subr.bf16.mxu0 0
        %1889 = vmatpush1.bf16.msra.mxu0 0
        %1890 = vmatprep.subr.bf16.mxu0 0
        %1891 = vmatpush1.bf16.msra.mxu0 0
        %1892 = vmatprep.subr.bf16.mxu0 0
        %1893 = vmatpush1.bf16.msra.mxu0 0
        %1894 = vmatprep.subr.bf16.mxu0 0
        %1895 = vmatpush1.bf16.msra.mxu0 0
        %1896 = vmatprep.subr.bf16.mxu0 0
        %1897 = vmatpush1.bf16.msra.mxu0 0
        %1898 = vmatprep.subr.bf16.mxu0 0
        %1899 = vmatpush1.bf16.msra.mxu0 0
        %1900 = vmatprep.subr.bf16.mxu0 0
        %1901 = vmatpush1.bf16.msra.mxu0 0
        %1902 = vmatprep.subr.bf16.mxu0 0
        %1903 = vmatpush1.bf16.msra.mxu0 0
        %1904 = vmatprep.subr.bf16.mxu0 0
        %1905 = vmatpush1.bf16.msra.mxu0 0
        %1906 = vmatprep.subr.bf16.mxu0 0
        %1907 = vmatpush1.bf16.msra.mxu0 0
        %1908 = vmatprep.subr.bf16.mxu0 0
        %1909 = vmatpush1.bf16.msra.mxu0 0
        %1910 = vmatprep.subr.bf16.mxu0 0
        %1911 = vmatpush1.bf16.msra.mxu0 0
        %1912 = vmatprep.mubr.bf16.mxu0 0
        %1913 = vmatmul.mubr.bf16.gmra.mrb[0].mxu0 %v642
        %v1914 = vpop.f32.mrb[0].mxu0
        %v1915 = vadd.f32 %v1802, %v1914
        %v1916 = vpop.f32.mrb[0].mxu0
        %v1917 = vadd.f32 %v1804, %v1916
        %v1918 = vpop.f32.mrb[0].mxu0
        %v1919 = vadd.f32 %v1806, %v1918
        %v1920 = vpop.f32.mrb[0].mxu0
        %v1921 = vadd.f32 %v1808, %v1920
        %1922 = vmatprep.mubr.bf16.mxu0 0
        %1923 = vmatmul.mubr.bf16.gmra.mrb[0].mxu0 %v645
        %v1924 = vpop.f32.mrb[0].mxu0
        %v1925 = vadd.f32 %v1812, %v1924
        %v1926 = vpop.f32.mrb[0].mxu0
        %v1927 = vadd.f32 %v1814, %v1926
        %v1928 = vpop.f32.mrb[0].mxu0
        %v1929 = vadd.f32 %v1816, %v1928
        %v1930 = vpop.f32.mrb[0].mxu0
        %v1931 = vadd.f32 %v1818, %v1930
        %1932 = vmatprep.mubr.bf16.mxu0 0
        %1933 = vmatmul.mubr.bf16.gmra.mrb[0].mxu0 %v648
        %v1934 = vpop.f32.mrb[0].mxu0
        %v1935 = vadd.f32 %v1822, %v1934
        %v1936 = vpop.f32.mrb[0].mxu0
        %v1937 = vadd.f32 %v1824, %v1936
        %v1938 = vpop.f32.mrb[0].mxu0
        %v1939 = vadd.f32 %v1826, %v1938
        %v1940 = vpop.f32.mrb[0].mxu0
        %v1941 = vadd.f32 %v1828, %v1940
        %1942 = vmatprep.mubr.bf16.mxu0 0
        %1943 = vmatmul.mubr.bf16.gmra.mrb[0].mxu0 %v651
        %v1944 = vpop.f32.mrb[0].mxu0
        %v1945 = vadd.f32 %v1832, %v1944
        %v1946 = vpop.f32.mrb[0].mxu0
        %v1947 = vadd.f32 %v1834, %v1946
        %v1948 = vpop.f32.mrb[0].mxu0
        %v1949 = vadd.f32 %v1836, %v1948
        %v1950 = vpop.f32.mrb[0].mxu0
        %v1951 = vadd.f32 %v1838, %v1950
        %1952 = vmatprep.mubr.bf16.mxu0 0
        %1953 = vmatmul.mubr.bf16.gmra.mrb[0].mxu0 %v654
        %v1954 = vpop.f32.mrb[0].mxu0
        %v1955 = vadd.f32 %v1842, %v1954
        %v1956 = vpop.f32.mrb[0].mxu0
        %v1957 = vadd.f32 %v1844, %v1956
        %v1958 = vpop.f32.mrb[0].mxu0
        %v1959 = vadd.f32 %v1846, %v1958
        %v1960 = vpop.f32.mrb[0].mxu0
        %v1961 = vadd.f32 %v1848, %v1960
        %1962 = vmatprep.mubr.bf16.mxu0 0
        %1963 = vmatmul.mubr.bf16.gmra.mrb[0].mxu0 %v657
        %v1964 = vpop.f32.mrb[0].mxu0
        %v1965 = vadd.f32 %v1852, %v1964
        %v1966 = vpop.f32.mrb[0].mxu0
        %v1967 = vadd.f32 %v1854, %v1966
        %v1968 = vpop.f32.mrb[0].mxu0
        %v1969 = vadd.f32 %v1856, %v1968
        %v1970 = vpop.f32.mrb[0].mxu0
        %v1971 = vadd.f32 %v1858, %v1970
        %1972 = vmatprep.mubr.bf16.mxu0 0
        %1973 = vmatmul.mubr.bf16.gmra.mrb[0].mxu0 %v660
        %v1974 = vpop.f32.mrb[0].mxu0
        %v1975 = vadd.f32 %v1862, %v1974
        %v1976 = vpop.f32.mrb[0].mxu0
        %v1977 = vadd.f32 %v1864, %v1976
        %v1978 = vpop.f32.mrb[0].mxu0
        %v1979 = vadd.f32 %v1866, %v1978
        %v1980 = vpop.f32.mrb[0].mxu0
        %v1981 = vadd.f32 %v1868, %v1980
        %1982 = vmatprep.mubr.bf16.mxu0 0
        %1983 = vmatmul.mubr.bf16.gmra.mrb[0].mxu0 %v663
        %v1984 = vpop.f32.mrb[0].mxu0
        %v1985 = vadd.f32 %v1872, %v1984
        %v1986 = vpop.f32.mrb[0].mxu0
        %v1987 = vadd.f32 %v1874, %v1986
        %v1988 = vpop.f32.mrb[0].mxu0
        %v1989 = vadd.f32 %v1876, %v1988
        %v1990 = vpop.f32.mrb[0].mxu0
        %v1991 = vadd.f32 %v1878, %v1990
        %1992 = vdwg.mxu0
        %v2025 = vrot.slane %v1915, 2
        %v2026 = vrot.slane %v1919, 2
        %v2027 = vsel %vm665, %v2025, %v2026
        %v2028 = vrot.slane %v1917, 2
        %v2029 = vrot.slane %v1921, 2
        %v2030 = vsel %vm665, %v2028, %v2029
        %v2031 = vrot.slane %v1925, 2
        %v2032 = vrot.slane %v1929, 2
        %v2033 = vsel %vm665, %v2031, %v2032
        %v2034 = vrot.slane %v1927, 2
        %v2035 = vrot.slane %v1931, 2
        %v2036 = vsel %vm665, %v2034, %v2035
        %v2037 = vrot.slane %v1935, 2
        %v2038 = vrot.slane %v1939, 2
        %v2039 = vsel %vm665, %v2037, %v2038
        %v2040 = vrot.slane %v1937, 2
        %v2041 = vrot.slane %v1941, 2
        %v2042 = vsel %vm665, %v2040, %v2041
        %v2043 = vrot.slane %v1945, 2
        %v2044 = vrot.slane %v1949, 2
        %v2045 = vsel %vm665, %v2043, %v2044
        %v2046 = vrot.slane %v1947, 2
        %v2047 = vrot.slane %v1951, 2
        %v2048 = vsel %vm665, %v2046, %v2047
        %v2049 = vrot.slane %v1955, 2
        %v2050 = vrot.slane %v1959, 2
        %v2051 = vsel %vm665, %v2049, %v2050
        %v2052 = vrot.slane %v1957, 2
        %v2053 = vrot.slane %v1961, 2
        %v2054 = vsel %vm665, %v2052, %v2053
        %v2055 = vrot.slane %v1965, 2
        %v2056 = vrot.slane %v1969, 2
        %v2057 = vsel %vm665, %v2055, %v2056
        %v2058 = vrot.slane %v1967, 2
        %v2059 = vrot.slane %v1971, 2
        %v2060 = vsel %vm665, %v2058, %v2059
        %v2061 = vrot.slane %v1975, 2
        %v2062 = vrot.slane %v1979, 2
        %v2063 = vsel %vm665, %v2061, %v2062
        %v2064 = vrot.slane %v1977, 2
        %v2065 = vrot.slane %v1981, 2
        %v2066 = vsel %vm665, %v2064, %v2065
        %v2067 = vrot.slane %v1985, 2
        %v2068 = vrot.slane %v1989, 2
        %v2069 = vsel %vm665, %v2067, %v2068
        %v2070 = vrot.slane %v1987, 2
        %v2071 = vrot.slane %v1991, 2
        %v2072 = vsel %vm665, %v2070, %v2071
        %v2105 = vadd.f32 %v1502, %v2027
        %v2106 = vadd.f32 %v1503, %v2030
        %v2107 = vadd.f32 %v1504, %v2026
        %v2108 = vadd.f32 %v1505, %v2029
        %v2109 = vadd.f32 %v1506, %v2033
        %v2110 = vadd.f32 %v1507, %v2036
        %v2111 = vadd.f32 %v1508, %v2032
        %v2112 = vadd.f32 %v1509, %v2035
        %v2113 = vadd.f32 %v1510, %v2039
        %v2114 = vadd.f32 %v1511, %v2042
        %v2115 = vadd.f32 %v1512, %v2038
        %v2116 = vadd.f32 %v1513, %v2041
        %v2117 = vadd.f32 %v1514, %v2045
        %v2118 = vadd.f32 %v1515, %v2048
        %v2119 = vadd.f32 %v1516, %v2044
        %v2120 = vadd.f32 %v1517, %v2047
        %v2121 = vadd.f32 %v1518, %v2051
        %v2122 = vadd.f32 %v1519, %v2054
        %v2123 = vadd.f32 %v1520, %v2050
        %v2124 = vadd.f32 %v1521, %v2053
        %v2125 = vadd.f32 %v1522, %v2057
        %v2126 = vadd.f32 %v1523, %v2060
        %v2127 = vadd.f32 %v1524, %v2056
        %v2128 = vadd.f32 %v1525, %v2059
        %v2129 = vadd.f32 %v1526, %v2063
        %v2130 = vadd.f32 %v1527, %v2066
        %v2131 = vadd.f32 %v1528, %v2062
        %v2132 = vadd.f32 %v1529, %v2065
        %v2133 = vadd.f32 %v1530, %v2069
        %v2134 = vadd.f32 %v1531, %v2072
        %v2135 = vadd.f32 %v1532, %v2068
        %v2136 = vadd.f32 %v1533, %v2071
        %v2137 = vmax.f32 %v2105, 0.0
        %v2138 = vmax.f32 %v2106, 0.0
        %v2139 = vmax.f32 %v2107, 0.0
        %v2140 = vmax.f32 %v2108, 0.0
        %v2141 = vmax.f32 %v2109, 0.0
        %v2142 = vmax.f32 %v2110, 0.0
        %v2143 = vmax.f32 %v2111, 0.0
        %v2144 = vmax.f32 %v2112, 0.0
        %v2145 = vmax.f32 %v2113, 0.0
        %v2146 = vmax.f32 %v2114, 0.0
        %v2147 = vmax.f32 %v2115, 0.0
        %v2148 = vmax.f32 %v2116, 0.0
        %v2149 = vmax.f32 %v2117, 0.0
        %v2150 = vmax.f32 %v2118, 0.0
        %v2151 = vmax.f32 %v2119, 0.0
        %v2152 = vmax.f32 %v2120, 0.0
        %v2153 = vmax.f32 %v2121, 0.0
        %v2154 = vmax.f32 %v2122, 0.0
        %v2155 = vmax.f32 %v2123, 0.0
        %v2156 = vmax.f32 %v2124, 0.0
        %v2157 = vmax.f32 %v2125, 0.0
        %v2158 = vmax.f32 %v2126, 0.0
        %v2159 = vmax.f32 %v2127, 0.0
        %v2160 = vmax.f32 %v2128, 0.0
        %v2161 = vmax.f32 %v2129, 0.0
        %v2162 = vmax.f32 %v2130, 0.0
        %v2163 = vmax.f32 %v2131, 0.0
        %v2164 = vmax.f32 %v2132, 0.0
        %v2165 = vmax.f32 %v2133, 0.0
        %v2166 = vmax.f32 %v2134, 0.0
        %v2167 = vmax.f32 %v2135, 0.0
        %v2168 = vmax.f32 %v2136, 0.0
        %v2169 = vsel %vm665, %v2139, -inf
        %v2170 = vmax.f32 %v2137, %v2169
        %v2171 = vrot.slane %v2170, 4
        %v2172 = vmax.f32 %v2170, %v2171
        %v2173 = vrot.slane %v2172, 2
        %v2174 = vmax.f32 %v2172, %v2173
        %v2175 = vrot.slane %v2174, 1
        %v2176 = vmax.f32 %v2174, %v2175
        %v2177 = vsel %vm665, %v2140, -inf
        %v2178 = vmax.f32 %v2138, %v2177
        %v2179 = vrot.slane %v2178, 4
        %v2180 = vmax.f32 %v2178, %v2179
        %v2181 = vrot.slane %v2180, 2
        %v2182 = vmax.f32 %v2180, %v2181
        %v2183 = vrot.slane %v2182, 1
        %v2184 = vmax.f32 %v2182, %v2183
        %v2185 = vsel %vm665, %v2143, -inf
        %v2186 = vmax.f32 %v2141, %v2185
        %v2187 = vrot.slane %v2186, 4
        %v2188 = vmax.f32 %v2186, %v2187
        %v2189 = vrot.slane %v2188, 2
        %v2190 = vmax.f32 %v2188, %v2189
        %v2191 = vrot.slane %v2190, 1
        %v2192 = vmax.f32 %v2190, %v2191
        %v2193 = vsel %vm665, %v2144, -inf
        %v2194 = vmax.f32 %v2142, %v2193
        %v2195 = vrot.slane %v2194, 4
        %v2196 = vmax.f32 %v2194, %v2195
        %v2197 = vrot.slane %v2196, 2
        %v2198 = vmax.f32 %v2196, %v2197
        %v2199 = vrot.slane %v2198, 1
        %v2200 = vmax.f32 %v2198, %v2199
        %v2201 = vsel %vm665, %v2147, -inf
        %v2202 = vmax.f32 %v2145, %v2201
        %v2203 = vrot.slane %v2202, 4
        %v2204 = vmax.f32 %v2202, %v2203
        %v2205 = vrot.slane %v2204, 2
        %v2206 = vmax.f32 %v2204, %v2205
        %v2207 = vrot.slane %v2206, 1
        %v2208 = vmax.f32 %v2206, %v2207
        %v2209 = vsel %vm665, %v2148, -inf
        %v2210 = vmax.f32 %v2146, %v2209
        %v2211 = vrot.slane %v2210, 4
        %v2212 = vmax.f32 %v2210, %v2211
        %v2213 = vrot.slane %v2212, 2
        %v2214 = vmax.f32 %v2212, %v2213
        %v2215 = vrot.slane %v2214, 1
        %v2216 = vmax.f32 %v2214, %v2215
        %v2217 = vsel %vm665, %v2151, -inf
        %v2218 = vmax.f32 %v2149, %v2217
        %v2219 = vrot.slane %v2218, 4
        %v2220 = vmax.f32 %v2218, %v2219
        %v2221 = vrot.slane %v2220, 2
        %v2222 = vmax.f32 %v2220, %v2221
        %v2223 = vrot.slane %v2222, 1
        %v2224 = vmax.f32 %v2222, %v2223
        %v2225 = vsel %vm665, %v2152, -inf
        %v2226 = vmax.f32 %v2150, %v2225
        %v2227 = vrot.slane %v2226, 4
        %v2228 = vmax.f32 %v2226, %v2227
        %v2229 = vrot.slane %v2228, 2
        %v2230 = vmax.f32 %v2228, %v2229
        %v2231 = vrot.slane %v2230, 1
        %v2232 = vmax.f32 %v2230, %v2231
        %v2233 = vsel %vm665, %v2155, -inf
        %v2234 = vmax.f32 %v2153, %v2233
        %v2235 = vrot.slane %v2234, 4
        %v2236 = vmax.f32 %v2234, %v2235
        %v2237 = vrot.slane %v2236, 2
        %v2238 = vmax.f32 %v2236, %v2237
        %v2239 = vrot.slane %v2238, 1
        %v2240 = vmax.f32 %v2238, %v2239
        %v2241 = vsel %vm665, %v2156, -inf
        %v2242 = vmax.f32 %v2154, %v2241
        %v2243 = vrot.slane %v2242, 4
        %v2244 = vmax.f32 %v2242, %v2243
        %v2245 = vrot.slane %v2244, 2
        %v2246 = vmax.f32 %v2244, %v2245
        %v2247 = vrot.slane %v2246, 1
        %v2248 = vmax.f32 %v2246, %v2247
        %v2249 = vsel %vm665, %v2159, -inf
        %v2250 = vmax.f32 %v2157, %v2249
        %v2251 = vrot.slane %v2250, 4
        %v2252 = vmax.f32 %v2250, %v2251
        %v2253 = vrot.slane %v2252, 2
        %v2254 = vmax.f32 %v2252, %v2253
        %v2255 = vrot.slane %v2254, 1
        %v2256 = vmax.f32 %v2254, %v2255
        %v2257 = vsel %vm665, %v2160, -inf
        %v2258 = vmax.f32 %v2158, %v2257
        %v2259 = vrot.slane %v2258, 4
        %v2260 = vmax.f32 %v2258, %v2259
        %v2261 = vrot.slane %v2260, 2
        %v2262 = vmax.f32 %v2260, %v2261
        %v2263 = vrot.slane %v2262, 1
        %v2264 = vmax.f32 %v2262, %v2263
        %v2265 = vsel %vm665, %v2163, -inf
        %v2266 = vmax.f32 %v2161, %v2265
        %v2267 = vrot.slane %v2266, 4
        %v2268 = vmax.f32 %v2266, %v2267
        %v2269 = vrot.slane %v2268, 2
        %v2270 = vmax.f32 %v2268, %v2269
        %v2271 = vrot.slane %v2270, 1
        %v2272 = vmax.f32 %v2270, %v2271
        %v2273 = vsel %vm665, %v2164, -inf
        %v2274 = vmax.f32 %v2162, %v2273
        %v2275 = vrot.slane %v2274, 4
        %v2276 = vmax.f32 %v2274, %v2275
        %v2277 = vrot.slane %v2276, 2
        %v2278 = vmax.f32 %v2276, %v2277
        %v2279 = vrot.slane %v2278, 1
        %v2280 = vmax.f32 %v2278, %v2279
        %v2281 = vsel %vm665, %v2167, -inf
        %v2282 = vmax.f32 %v2165, %v2281
        %v2283 = vrot.slane %v2282, 4
        %v2284 = vmax.f32 %v2282, %v2283
        %v2285 = vrot.slane %v2284, 2
        %v2286 = vmax.f32 %v2284, %v2285
        %v2287 = vrot.slane %v2286, 1
        %v2288 = vmax.f32 %v2286, %v2287
        %v2289 = vsel %vm665, %v2168, -inf
        %v2290 = vmax.f32 %v2166, %v2289
        %v2291 = vrot.slane %v2290, 4
        %v2292 = vmax.f32 %v2290, %v2291
        %v2293 = vrot.slane %v2292, 2
        %v2294 = vmax.f32 %v2292, %v2293
        %v2295 = vrot.slane %v2294, 1
        %v2296 = vmax.f32 %v2294, %v2295
        %v2297 = vmax.f32 %v2176, 0.0
        %v2298 = vmax.f32 %v2184, 0.0
        %v2299 = vmax.f32 %v2192, 0.0
        %v2300 = vmax.f32 %v2200, 0.0
        %v2301 = vmax.f32 %v2208, 0.0
        %v2302 = vmax.f32 %v2216, 0.0
        %v2303 = vmax.f32 %v2224, 0.0
        %v2304 = vmax.f32 %v2232, 0.0
        %v2305 = vmax.f32 %v2240, 0.0
        %v2306 = vmax.f32 %v2248, 0.0
        %v2307 = vmax.f32 %v2256, 0.0
        %v2308 = vmax.f32 %v2264, 0.0
        %v2309 = vmax.f32 %v2272, 0.0
        %v2310 = vmax.f32 %v2280, 0.0
        %v2311 = vmax.f32 %v2288, 0.0
        %v2312 = vmax.f32 %v2296, 0.0
        %v2313 = vpack.c.bf16 %v2297, %v2297
        %v2314 = vpack.c.bf16 %v2298, %v2298
        %v2315 = vpack.c.bf16 %v2299, %v2299
        %v2316 = vpack.c.bf16 %v2300, %v2300
        %v2317 = vpack.c.bf16 %v2301, %v2301
        %v2318 = vpack.c.bf16 %v2302, %v2302
        %v2319 = vpack.c.bf16 %v2303, %v2303
        %v2320 = vpack.c.bf16 %v2304, %v2304
        %v2321 = vpack.c.bf16 %v2305, %v2305
        %v2322 = vpack.c.bf16 %v2306, %v2306
        %v2323 = vpack.c.bf16 %v2307, %v2307
        %v2324 = vpack.c.bf16 %v2308, %v2308
        %v2325 = vpack.c.bf16 %v2309, %v2309
        %v2326 = vpack.c.bf16 %v2310, %v2310
        %v2327 = vpack.c.bf16 %v2311, %v2311
        %v2328 = vpack.c.bf16 %v2312, %v2312
        %v2329 = vld [vmem:[%s3] sm:$0xf]
        %v2330 = vld [vmem:[%s3 + $0x4] sm:$0xf]
        %v2331 = vld [vmem:[%s3 + $0x8] sm:$0xf]
        %v2332 = vld [vmem:[%s3 + $0xc] sm:$0xf]
        %v2333 = vld [vmem:[%s3 + $0x10] sm:$0xf]
        %v2334 = vld [vmem:[%s3 + $0x14] sm:$0xf]
        %v2335 = vld [vmem:[%s3 + $0x18] sm:$0xf]
        %v2336 = vld [vmem:[%s3 + $0x1c] sm:$0xf]
        %v2337 = vld [vmem:[%s3 + $0x20] sm:$0xf]
        %v2338 = vld [vmem:[%s3 + $0x24] sm:$0xf]
        %v2339 = vld [vmem:[%s3 + $0x28] sm:$0xf]
        %v2340 = vld [vmem:[%s3 + $0x2c] sm:$0xf]
        %v2341 = vld [vmem:[%s3 + $0x30] sm:$0xf]
        %v2342 = vld [vmem:[%s3 + $0x34] sm:$0xf]
        %v2343 = vld [vmem:[%s3 + $0x38] sm:$0xf]
        %v2344 = vld [vmem:[%s3 + $0x3c] sm:$0xf]
        %v2345 = vld [vmem:[%s3 + $0x40] sm:$0xf]
        %v2346 = vld [vmem:[%s3 + $0x44] sm:$0xf]
        %v2347 = vld [vmem:[%s3 + $0x48] sm:$0xf]
        %v2348 = vld [vmem:[%s3 + $0x4c] sm:$0xf]
        %v2349 = vld [vmem:[%s3 + $0x50] sm:$0xf]
        %v2350 = vld [vmem:[%s3 + $0x54] sm:$0xf]
        %v2351 = vld [vmem:[%s3 + $0x58] sm:$0xf]
        %v2352 = vld [vmem:[%s3 + $0x5c] sm:$0xf]
        %v2353 = vld [vmem:[%s3 + $0x60] sm:$0xf]
        %v2354 = vld [vmem:[%s3 + $0x64] sm:$0xf]
        %v2355 = vld [vmem:[%s3 + $0x68] sm:$0xf]
        %v2356 = vld [vmem:[%s3 + $0x6c] sm:$0xf]
        %v2357 = vld [vmem:[%s3 + $0x70] sm:$0xf]
        %v2358 = vld [vmem:[%s3 + $0x74] sm:$0xf]
        %v2359 = vld [vmem:[%s3 + $0x78] sm:$0xf]
        %v2360 = vld [vmem:[%s3 + $0x7c] sm:$0xf]
        %v2361 = vld [vmem:[%s4] sm:$0x1]
        %v2363 = vlaneseq
        %v2364 = vshrl.u32 %v2363, 7
        %v2365 = vsub.s32 0, %v2364
        %v2366 = vrot.slane %v2361, %v2365
        %v2384 = vunpack.c.l.b16 %v2313
        %v2385 = vunpack.c.l.b16 %v2314
        %v2386 = vunpack.c.l.b16 %v2315
        %v2387 = vunpack.c.l.b16 %v2316
        %v2388 = vunpack.c.l.b16 %v2317
        %v2389 = vunpack.c.l.b16 %v2318
        %v2390 = vunpack.c.l.b16 %v2319
        %v2391 = vunpack.c.l.b16 %v2320
        %v2392 = vunpack.c.l.b16 %v2321
        %v2393 = vunpack.c.l.b16 %v2322
        %v2394 = vunpack.c.l.b16 %v2323
        %v2395 = vunpack.c.l.b16 %v2324
        %v2396 = vunpack.c.l.b16 %v2325
        %v2397 = vunpack.c.l.b16 %v2326
        %v2398 = vunpack.c.l.b16 %v2327
        %v2399 = vunpack.c.l.b16 %v2328
        %vm2400 = vcmask 1041409
        %v2401 = vsel %vm2400, %v2386, %v2384
        %vm2402 = vcmask 1042434
        %v2403 = vsel %vm2402, %v2388, %v2401
        %vm2404 = vcmask 1043459
        %v2405 = vsel %vm2404, %v2390, %v2403
        %vm2406 = vcmask 1044484
        %v2407 = vsel %vm2406, %v2392, %v2405
        %vm2408 = vcmask 1045509
        %v2409 = vsel %vm2408, %v2394, %v2407
        %vm2410 = vcmask 1046534
        %v2411 = vsel %vm2410, %v2396, %v2409
        %vm2412 = vcmask 1047559
        %v2413 = vsel %vm2412, %v2398, %v2411
        %v2414 = vsel %vm2400, %v2387, %v2385
        %v2415 = vsel %vm2402, %v2389, %v2414
        %v2416 = vsel %vm2404, %v2391, %v2415
        %v2417 = vsel %vm2406, %v2393, %v2416
        %v2418 = vsel %vm2408, %v2395, %v2417
        %v2419 = vsel %vm2410, %v2397, %v2418
        %v2420 = vsel %vm2412, %v2399, %v2419
        %v2421 = vpack.c.b16 %v2413, %v2413
        %v2422 = vpack.c.b16 %v2420, %v2420
        %v2457 = vunpack.c.l.b16 %v2329
        %v2458 = vunpack.c.l.b16 %v2330
        %v2459 = vunpack.c.l.b16 %v2331
        %v2460 = vunpack.c.l.b16 %v2332
        %v2461 = vunpack.c.l.b16 %v2333
        %v2462 = vunpack.c.l.b16 %v2334
        %v2463 = vunpack.c.l.b16 %v2335
        %v2464 = vunpack.c.l.b16 %v2336
        %v2465 = vunpack.c.l.b16 %v2337
        %v2466 = vunpack.c.l.b16 %v2338
        %v2467 = vunpack.c.l.b16 %v2339
        %v2468 = vunpack.c.l.b16 %v2340
        %v2469 = vunpack.c.l.b16 %v2341
        %v2470 = vunpack.c.l.b16 %v2342
        %v2471 = vunpack.c.l.b16 %v2343
        %v2472 = vunpack.c.l.b16 %v2344
        %v2473 = vunpack.c.l.b16 %v2345
        %v2474 = vunpack.c.l.b16 %v2346
        %v2475 = vunpack.c.l.b16 %v2347
        %v2476 = vunpack.c.l.b16 %v2348
        %v2477 = vunpack.c.l.b16 %v2349
        %v2478 = vunpack.c.l.b16 %v2350
        %v2479 = vunpack.c.l.b16 %v2351
        %v2480 = vunpack.c.l.b16 %v2352
        %v2481 = vunpack.c.l.b16 %v2353
        %v2482 = vunpack.c.l.b16 %v2354
        %v2483 = vunpack.c.l.b16 %v2355
        %v2484 = vunpack.c.l.b16 %v2356
        %v2485 = vunpack.c.l.b16 %v2357
        %v2486 = vunpack.c.l.b16 %v2358
        %v2487 = vunpack.c.l.b16 %v2359
        %v2488 = vunpack.c.l.b16 %v2360
        %v2489 = vpack.c.b16 %v2458, %v2457
        %v2490 = vpack.c.b16 %v2460, %v2459
        %v2491 = vpack.c.b16 %v2462, %v2461
        %v2492 = vpack.c.b16 %v2464, %v2463
        %v2493 = vpack.c.b16 %v2466, %v2465
        %v2494 = vpack.c.b16 %v2468, %v2467
        %v2495 = vpack.c.b16 %v2470, %v2469
        %v2496 = vpack.c.b16 %v2472, %v2471
        %v2497 = vpack.c.b16 %v2474, %v2473
        %v2498 = vpack.c.b16 %v2476, %v2475
        %v2499 = vpack.c.b16 %v2478, %v2477
        %v2500 = vpack.c.b16 %v2480, %v2479
        %v2501 = vpack.c.b16 %v2482, %v2481
        %v2502 = vpack.c.b16 %v2484, %v2483
        %v2503 = vpack.c.b16 %v2486, %v2485
        %v2504 = vpack.c.b16 %v2488, %v2487
        %2521 = vmatprep.subr.bf16.mxu0 0
        %2522 = vmatpush1.bf16.msra.mxu0 %v2489
        %2523 = vmatprep.subr.bf16.mxu0 0
        %2524 = vmatpush1.bf16.msra.mxu0 %v2490
        %2525 = vmatprep.subr.bf16.mxu0 0
        %2526 = vmatpush1.bf16.msra.mxu0 %v2491
        %2527 = vmatprep.subr.bf16.mxu0 0
        %2528 = vmatpush1.bf16.msra.mxu0 %v2492
        %2529 = vmatprep.subr.bf16.mxu0 0
        %2530 = vmatpush1.bf16.msra.mxu0 %v2493
        %2531 = vmatprep.subr.bf16.mxu0 0
        %2532 = vmatpush1.bf16.msra.mxu0 %v2494
        %2533 = vmatprep.subr.bf16.mxu0 0
        %2534 = vmatpush1.bf16.msra.mxu0 %v2495
        %2535 = vmatprep.subr.bf16.mxu0 0
        %2536 = vmatpush1.bf16.msra.mxu0 %v2496
        %2537 = vmatprep.subr.bf16.mxu0 0
        %2538 = vmatpush1.bf16.msra.mxu0 %v2497
        %2539 = vmatprep.subr.bf16.mxu0 0
        %2540 = vmatpush1.bf16.msra.mxu0 %v2498
        %2541 = vmatprep.subr.bf16.mxu0 0
        %2542 = vmatpush1.bf16.msra.mxu0 %v2499
        %2543 = vmatprep.subr.bf16.mxu0 0
        %2544 = vmatpush1.bf16.msra.mxu0 %v2500
        %2545 = vmatprep.subr.bf16.mxu0 0
        %2546 = vmatpush1.bf16.msra.mxu0 %v2501
        %2547 = vmatprep.subr.bf16.mxu0 0
        %2548 = vmatpush1.bf16.msra.mxu0 %v2502
        %2549 = vmatprep.subr.bf16.mxu0 0
        %2550 = vmatpush1.bf16.msra.mxu0 %v2503
        %2551 = vmatprep.subr.bf16.mxu0 0
        %2552 = vmatpush1.bf16.msra.mxu0 %v2504
        %2553 = vmatprep.mubr.bf16.mxu0 %v2422
        %2554 = vmatmul.mubr.bf16.gmra.mrb[0].mxu0 %v2421
        %v2555 = vpop.f32.mrb[0].mxu0
        %v2556 = vadd.f32 %v2366, %v2555
        %v2557 = vpop.f32.mrb[0].mxu0
        %v2558 = vpop.f32.mrb[0].mxu0
        %v2559 = vpop.f32.mrb[0].mxu0
        %2560 = vdwg.mxu0
        %v2561 = vmax.f32 %v2556, 0.0
        %v2562 = vpack.c.bf16 %v2561, %v2561
        %v2563 = vld [vmem:[%s5] sm:$0xf]
        %v2564 = vld [vmem:[%s5 + $0x4] sm:$0xf]
        %v2565 = vld [vmem:[%s5 + $0x8] sm:$0xf]
        %v2566 = vld [vmem:[%s5 + $0xc] sm:$0xf]
        %v2567 = vld [vmem:[%s6] sm:$0x1]
        %v2569 = vlaneseq
        %v2570 = vshrl.u32 %v2569, 7
        %v2571 = vsub.s32 0, %v2570
        %v2572 = vrot.slane %v2567, %v2571
        %v2578 = vunpack.c.l.b16 %v2563
        %v2579 = vunpack.c.l.b16 %v2564
        %v2580 = vunpack.c.l.b16 %v2565
        %v2581 = vunpack.c.l.b16 %v2566
        %v2582 = vpack.c.b16 %v2579, %v2578
        %v2583 = vpack.c.b16 %v2581, %v2580
        %vm2586 = vcmask 261120
        %v2588 = vsel %vm2586, %v2562, 0
        %2590 = vmatprep.subr.bf16.mxu0 0
        %2591 = vmatpush1.bf16.msra.mxu0 %v2582
        %2592 = vmatprep.subr.bf16.mxu0 0
        %2593 = vmatpush1.bf16.msra.mxu0 %v2583
        %2594 = vmatprep.subr.bf16.mxu0 0
        %2595 = vmatpush1.bf16.msra.mxu0 0
        %2596 = vmatprep.subr.bf16.mxu0 0
        %2597 = vmatpush1.bf16.msra.mxu0 0
        %2598 = vmatprep.subr.bf16.mxu0 0
        %2599 = vmatpush1.bf16.msra.mxu0 0
        %2600 = vmatprep.subr.bf16.mxu0 0
        %2601 = vmatpush1.bf16.msra.mxu0 0
        %2602 = vmatprep.subr.bf16.mxu0 0
        %2603 = vmatpush1.bf16.msra.mxu0 0
        %2604 = vmatprep.subr.bf16.mxu0 0
        %2605 = vmatpush1.bf16.msra.mxu0 0
        %2606 = vmatprep.subr.bf16.mxu0 0
        %2607 = vmatpush1.bf16.msra.mxu0 0
        %2608 = vmatprep.subr.bf16.mxu0 0
        %2609 = vmatpush1.bf16.msra.mxu0 0
        %2610 = vmatprep.subr.bf16.mxu0 0
        %2611 = vmatpush1.bf16.msra.mxu0 0
        %2612 = vmatprep.subr.bf16.mxu0 0
        %2613 = vmatpush1.bf16.msra.mxu0 0
        %2614 = vmatprep.subr.bf16.mxu0 0
        %2615 = vmatpush1.bf16.msra.mxu0 0
        %2616 = vmatprep.subr.bf16.mxu0 0
        %2617 = vmatpush1.bf16.msra.mxu0 0
        %2618 = vmatprep.subr.bf16.mxu0 0
        %2619 = vmatpush1.bf16.msra.mxu0 0
        %2620 = vmatprep.subr.bf16.mxu0 0
        %2621 = vmatpush1.bf16.msra.mxu0 0
        %2622 = vmatprep.mubr.bf16.mxu0 0
        %2623 = vmatmul.mubr.bf16.gmra.mrb[0].mxu0 %v2588
        %v2624 = vpop.f32.mrb[0].mxu0
        %v2625 = vadd.f32 %v2572, %v2624
        %v2626 = vpop.f32.mrb[0].mxu0
        %v2627 = vpop.f32.mrb[0].mxu0
        %v2628 = vpop.f32.mrb[0].mxu0
        %2629 = vdwg.mxu0
        %vm2630 = vcmask 31744
        %v2631 = vsel %vm2630, %v2625, -inf
        %2632 = vmax.xlane.f32.xlu0 %v2631
        %v2633 = vpop.xlane.xlu0 %2632
        %v2634 = vsub.f32 %v2625, %v2633
        %v2635 = vmul.f32 %v2634, 1.442695
        %v2636 = vpow.pop %v2635
        %v2637 = vsel %vm2630, %v2636, 0.0
        %2638 = vadd.xlane.f32.xlu0 %v2637
        %v2639 = vpop.xlane.xlu0 %2638
        %v2640 = vlog2.pop %v2639
        %v2641 = vmul.f32 %v2640, 0.6931472
        %v2642 = vadd.f32 %v2641, %v2633
        %v2643 = vsub.f32 %v2625, %v2642
        %2644 = vst.msk [vmem:[%s328] sm:$0xff] %vm2630, %v2643
        %p2645 = scmp.lt.s32.totalorder %s22, 1
        %s2646 = scalar_select %p2645, %s22, 1
        %s2647 = smul.addr %s2646, 8
        %s2648 = scalar_lea.vmem %s7, %s2647
        // Predicated region
        $region57: #{tpu_custom_call.1} parent=47 // pred_check
          %p2649 = pneg %p192
        $region58: #{tpu_custom_call.1} parent=47 // pred_check_branch
          %2651 = sbr.rel (%p2649) target = $region60
        $region59: #{tpu_custom_call.1} parent=47 // pred_region
          _
        $region60: #{tpu_custom_call.1} parent=47 // pred_fallthru
          _
      $region48: #{tpu_custom_call.1} parent=5 // pred_fallthru
        _
      %p2652 = scmp.le.s32.totalorder 2, %s17
      // Predicated region
      $region61: #{tpu_custom_call.1} parent=5 // pred_check
        %p2653 = pneg %p2652
      $region62: #{tpu_custom_call.1} parent=5 // pred_check_branch
        %2655 = sbr.rel (%p2653) target = $region64
      $region63: #{tpu_custom_call.1} parent=5 // pred_region
        %s2656 = ssub.s32 %s17, 2
        // Predicated region
        $region65: #{tpu_custom_call.1} parent=63 // pred_check
          %p2657 = pneg %p198
        $region66: #{tpu_custom_call.1} parent=63 // pred_check_branch
          %2659 = sbr.rel (%p2657) target = $region68
        $region67: #{tpu_custom_call.1} parent=63 // pred_region
          %p2660 = scmp.lt.s32.totalorder %s23, 1
          %s2661 = scalar_select %p2660, %s23, 1
          %s2662 = smul.addr %s2661, 8
          %s2663 = scalar_lea.vmem %s7, %s2662
        $region68: #{tpu_custom_call.1} parent=63 // pred_fallthru
          _
      $region64: #{tpu_custom_call.1} parent=5 // pred_fallthru
        _
    $region6: #{tpu_custom_call.1} parent=1 // loop_footer
      %s21 = sadd.s32 1, %s17
    $region7: #{tpu_custom_call.1} parent=1 // loop_footer_branch
      %16 = sbr.rel target = $region3
    $region8: #{tpu_custom_call.1} parent=1 // loop_exit
      _
    %2664 = vsyncpa [#allocation3], 1
    %s2665 = scalar_lea.sflag [#allocation3], 1
    %2666 = vsyncpa %s2665, 1
    %2667 = vsyncpa [#allocation5], 1

</llo_original>
